<compile_context>
chip_gen: v6e
topology: v6e:2x2x1
jax: 0.10.0
libtpu: 0.0.40
codegen_flags: <defaults>
</compile_context>

<pallas_src>
import math
import functools

import jax
import jax.numpy as jnp
from jax import lax
from jax.experimental import pallas as pl
from jax.experimental.pallas import tpu as pltpu


# ----------------------------- Pallas kernel --------------------------------

def _make_fused_mha_kernel(h, d_k, return_attn, compute_dtype):
    """One grid step = one batch element.  Blocks are (1, S, d_model): lane-dense.

    Inside the step:  Q/K/V projections (weights resident), per-head scaled
    dot-product attention (static unroll over heads, column slices), head
    merge via one concatenate, and the final output projection -- all without
    leaving VMEM.
    """
    scale = 1.0 / math.sqrt(d_k)

    def kernel(xq_ref, xk_ref, xv_ref, w_qkv_ref, b_qkv_ref,
               w_out_ref, b_out_ref, o_ref, *maybe_p):
        p_ref = maybe_p[0] if return_attn else None

        def proj(x_ref, j):
            acc = jnp.dot(
                x_ref[0].astype(compute_dtype),
                w_qkv_ref[j].astype(compute_dtype),
                preferred_element_type=jnp.float32,
            )
            return acc + b_qkv_ref[j]            # (S, d_model), f32

        qb = proj(xq_ref, 0)                     # (Sq, d_model)
        kb = proj(xk_ref, 1)                     # (Sk, d_model)
        vb = proj(xv_ref, 2)                     # (Sk, d_model)

        outs, ps = [], []
        for hh in range(h):                      # static unroll over heads
            lo, hi = hh * d_k, (hh + 1) * d_k
            q = (qb[:, lo:hi] * scale).astype(compute_dtype)   # fold scale here
            k = kb[:, lo:hi].astype(compute_dtype)
            v = vb[:, lo:hi].astype(compute_dtype)

            # q @ k.T without materializing a transpose.
            scores = lax.dot_general(
                q, k, (((1,), (1,)), ((), ())),
                preferred_element_type=jnp.float32,
            )                                    # (Sq, Sk), f32

            # numerically-stable softmax over keys
            m = jnp.max(scores, axis=-1, keepdims=True)
            e = jnp.exp(scores - m)
            denom = jnp.sum(e, axis=-1, keepdims=True)
            p = e * pl.reciprocal(denom, approx=True)           # EUP slot

            outs.append(
                jnp.dot(p.astype(compute_dtype), v,
                        preferred_element_type=jnp.float32)
            )                                    # (Sq, d_k)
            if return_attn:
                ps.append(p)

        # heads merged with one dense (Sq, d_model) concatenate -> final linear
        merged = jnp.concatenate(outs, axis=-1)                 # (Sq, d_model)
        out = jnp.dot(
            merged.astype(compute_dtype),
            w_out_ref[...].astype(compute_dtype),
            preferred_element_type=jnp.float32,
        ) + b_out_ref[...]
        o_ref[0] = out.astype(o_ref.dtype)

        if return_attn:
            p_ref[0] = jnp.stack(ps, axis=0).astype(p_ref.dtype)

    return kernel


# ------------------------------- wrappers ------------------------------------

def prepare_params(params):
    """One-time weight prep (outside the hot path): transpose to (d_in, d_out),
    fuse Q/K/V weights into a stacked (3, d_in, d_out) tensor, reshape biases."""
    (wq, bq), (wk, bk), (wv, bv), (wo, bo) = params
    d_model = wq.shape[0]
    w_qkv = jnp.stack([wq.T, wk.T, wv.T], axis=0)            # (3, d_model, d_model)
    b_qkv = jnp.stack([bq, bk, bv], axis=0).reshape(3, 1, d_model)
    w_out = wo.T                                              # (d_model, d_model)
    b_out = bo.reshape(1, d_model)
    return w_qkv, b_qkv, w_out, b_out


def multi_headed_attention(query, key, value, prepared, h, *,
                           return_attn=False, compute_dtype=jnp.float32):
    """Forward pass matching MultiHeadedAttention.forward (mask=None path).

    `prepared` is the output of prepare_params (weights pre-transposed/fused).
    Set compute_dtype=jnp.bfloat16 on v5e/v6e/v7x for MXU throughput
    (accumulation and softmax statistics stay f32).
    """
    B, Sq, d_model = query.shape
    _, Sk, _ = key.shape
    assert value.shape == key.shape
    assert d_model % h == 0
    d_k = d_model // h

    w_qkv, b_qkv, w_out, b_out = prepared
    kernel = _make_fused_mha_kernel(h, d_k, return_attn, compute_dtype)

    q_spec = pl.BlockSpec((1, Sq, d_model), lambda b: (b, 0, 0))
    kv_spec = pl.BlockSpec((1, Sk, d_model), lambda b: (b, 0, 0))
    # Weights / biases: same block every grid step -> resident in VMEM.
    w_qkv_spec = pl.BlockSpec((3, d_model, d_model), lambda b: (0, 0, 0))
    b_qkv_spec = pl.BlockSpec((3, 1, d_model), lambda b: (0, 0, 0))
    w_out_spec = pl.BlockSpec((d_model, d_model), lambda b: (0, 0))
    b_out_spec = pl.BlockSpec((1, d_model), lambda b: (0, 0))

    if return_attn:
        out_shape = (jax.ShapeDtypeStruct((B, Sq, d_model), jnp.float32),
                     jax.ShapeDtypeStruct((B, h, Sq, Sk), jnp.float32))
        out_specs = (q_spec,
                     pl.BlockSpec((1, h, Sq, Sk), lambda b: (b, 0, 0, 0)))
    else:
        out_shape = jax.ShapeDtypeStruct((B, Sq, d_model), jnp.float32)
        out_specs = q_spec

    res = pl.pallas_call(
        kernel,
        out_shape=out_shape,
        grid=(B,),
        in_specs=[q_spec, kv_spec, kv_spec,
                  w_qkv_spec, b_qkv_spec, w_out_spec, b_out_spec],
        out_specs=out_specs,
        compiler_params=pltpu.CompilerParams(
            dimension_semantics=("parallel",)),
    )(query, key, value, w_qkv, b_qkv, w_out, b_out)

    if return_attn:
        return res[0], res[1]
    return res


# ------------------------------ reference ------------------------------------

def _reference(query, key, value, params, h):
    B, S, d_model = query.shape
    d_k = d_model // h
    (wq, bq), (wk, bk), (wv, bv), (wo, bo) = params

    def lin(x, w, b):
        return x @ w.T + b

    def split(x):
        return x.reshape(B, -1, h, d_k).transpose(0, 2, 1, 3)

    q = split(lin(query, wq, bq))
    k = split(lin(key, wk, bk))
    v = split(lin(value, wv, bv))
    scores = jnp.einsum("bhqd,bhkd->bhqk", q, k) / math.sqrt(d_k)
    p = jax.nn.softmax(scores, axis=-1)
    o = jnp.einsum("bhqk,bhkd->bhqd", p, v)
    o = o.transpose(0, 2, 1, 3).reshape(B, -1, d_model)
    return lin(o, wo, bo), p


# -------------------------------- main ----------------------------------------

if __name__ == "__main__":
    B, S, d_model, h = 2, 8, 32, 4

    key0 = jax.random.PRNGKey(0)
    keys = jax.random.split(key0, 12)

    # Deterministic "synthetic checkpoint": 4 Linear(d_model, d_model) layers.
    bound = 1.0 / math.sqrt(d_model)
    params = []
    for i in range(4):
        w = jax.random.uniform(keys[i], (d_model, d_model), jnp.float32, -bound, bound)
        b = jax.random.uniform(keys[4 + i], (d_model,), jnp.float32, -bound, bound)
        params.append((w, b))

    query = jax.random.normal(keys[8], (B, S, d_model), jnp.float32)
    key_t = jax.random.normal(keys[9], (B, S, d_model), jnp.float32)
    value = jax.random.normal(keys[10], (B, S, d_model), jnp.float32)

    # One-time weight prep (outside the hot path).
    prepared = prepare_params(params)

    ref_out, ref_attn = _reference(query, key_t, value, params, h)

    # Path with attention probabilities requested (optional output).
    out, attn = multi_headed_attention(query, key_t, value, prepared, h,
                                       return_attn=True)
    out = jax.block_until_ready(out)
    attn = jax.block_until_ready(attn)

    assert out.shape == (B, S, d_model)
    assert attn.shape == (B, h, S, S)
    # Tolerance accounts for the approx-reciprocal softmax denominator.
    assert jnp.allclose(out, ref_out, atol=5e-3, rtol=5e-3), "output mismatch"
    assert jnp.allclose(attn, ref_attn, atol=5e-3, rtol=5e-3), "attn mismatch"

    # Default path (matches nn.Module.forward return: projected output only;
    # skips the O(B*h*S^2) HBM writeback of the probabilities).
    out2 = multi_headed_attention(query, key_t, value, prepared, h)
    out2 = jax.block_until_ready(out2)
    assert out2.shape == (B, S, d_model)
    assert jnp.allclose(out2, ref_out, atol=5e-3, rtol=5e-3), "default-path mismatch"
    assert jnp.allclose(out2, out, atol=1e-6, rtol=1e-6)

    print("KERNEL_OK")
</pallas_src>

<mosaic_0001>
module attributes {stable_mosaic.version = 11 : i64} {
  func.func @kernel(%arg0: i32, %arg1: memref<1x8x32xf32, #tpu.memory_space<vmem>>, %arg2: memref<1x8x32xf32, #tpu.memory_space<vmem>>, %arg3: memref<1x8x32xf32, #tpu.memory_space<vmem>>, %arg4: memref<3x32x32xf32, #tpu.memory_space<vmem>>, %arg5: memref<3x1x32xf32, #tpu.memory_space<vmem>>, %arg6: memref<32x32xf32, #tpu.memory_space<vmem>>, %arg7: memref<1x32xf32, #tpu.memory_space<vmem>>, %arg8: memref<1x8x32xf32, #tpu.memory_space<vmem>>, %arg9: memref<1x4x8x8xf32, #tpu.memory_space<vmem>>) attributes {dimension_semantics = [#tpu.dimension_semantics<parallel>], iteration_bounds = array<i64: 2>, scalar_prefetch = 0 : i64, scratch_operands = 0 : i64, tpu.core_type = #tpu.core_type<tc>, window_params = [{transform_indices = @transform_0, window_bounds = array<i64: 1, 8, 32>}, {transform_indices = @transform_1, window_bounds = array<i64: 1, 8, 32>}, {transform_indices = @transform_2, window_bounds = array<i64: 1, 8, 32>}, {pipeline_mode = #tpu.pipeline_mode<synchronous>, transform_indices = @transform_3, window_bounds = array<i64: 3, 32, 32>}, {pipeline_mode = #tpu.pipeline_mode<synchronous>, transform_indices = @transform_4, window_bounds = array<i64: 3, 1, 32>}, {pipeline_mode = #tpu.pipeline_mode<synchronous>, transform_indices = @transform_5, window_bounds = array<i64: 32, 32>}, {pipeline_mode = #tpu.pipeline_mode<synchronous>, transform_indices = @transform_6, window_bounds = array<i64: 1, 32>}, {transform_indices = @transform_7, window_bounds = array<i64: 1, 8, 32>}, {transform_indices = @transform_8, window_bounds = array<i64: 1, 4, 8, 8>}]} {
    %c0 = arith.constant 0 : index
    %c0_0 = arith.constant 0 : index
    %c0_1 = arith.constant 0 : index
    %0 = vector.load %arg1[%c0, %c0_0, %c0_1] : memref<1x8x32xf32, #tpu.memory_space<vmem>>, vector<1x8x32xf32>
    %1 = vector.shape_cast %0 : vector<1x8x32xf32> to vector<8x32xf32>
    %c0_2 = arith.constant 0 : index
    %c0_3 = arith.constant 0 : index
    %c0_4 = arith.constant 0 : index
    %2 = vector.load %arg4[%c0_2, %c0_3, %c0_4] : memref<3x32x32xf32, #tpu.memory_space<vmem>>, vector<1x32x32xf32>
    %3 = vector.shape_cast %2 : vector<1x32x32xf32> to vector<32x32xf32>
    %cst = arith.constant dense<0.000000e+00> : vector<8x32xf32>
    %4 = tpu.matmul %1, %3, %cst {dimension_numbers = #tpu.dot_dimension_numbers<[1], [0], [0], [1], [0, 0, 1, 1], [], []>} : vector<8x32xf32>, vector<32x32xf32>, vector<8x32xf32> -> vector<8x32xf32>
    %c0_5 = arith.constant 0 : index
    %c0_6 = arith.constant 0 : index
    %c0_7 = arith.constant 0 : index
    %5 = vector.load %arg5[%c0_5, %c0_6, %c0_7] : memref<3x1x32xf32, #tpu.memory_space<vmem>>, vector<1x1x32xf32>
    %6 = vector.shape_cast %5 : vector<1x1x32xf32> to vector<1x32xf32>
    %7 = vector.broadcast %6 : vector<1x32xf32> to vector<8x32xf32>
    %8 = arith.addf %4, %7 : vector<8x32xf32>
    %c0_8 = arith.constant 0 : index
    %c0_9 = arith.constant 0 : index
    %c0_10 = arith.constant 0 : index
    %9 = vector.load %arg2[%c0_8, %c0_9, %c0_10] : memref<1x8x32xf32, #tpu.memory_space<vmem>>, vector<1x8x32xf32>
    %10 = vector.shape_cast %9 : vector<1x8x32xf32> to vector<8x32xf32>
    %c1 = arith.constant 1 : index
    %c0_11 = arith.constant 0 : index
    %c0_12 = arith.constant 0 : index
    %11 = vector.load %arg4[%c1, %c0_11, %c0_12] : memref<3x32x32xf32, #tpu.memory_space<vmem>>, vector<1x32x32xf32>
    %12 = vector.shape_cast %11 : vector<1x32x32xf32> to vector<32x32xf32>
    %cst_13 = arith.constant dense<0.000000e+00> : vector<8x32xf32>
    %13 = tpu.matmul %10, %12, %cst_13 {dimension_numbers = #tpu.dot_dimension_numbers<[1], [0], [0], [1], [0, 0, 1, 1], [], []>} : vector<8x32xf32>, vector<32x32xf32>, vector<8x32xf32> -> vector<8x32xf32>
    %c1_14 = arith.constant 1 : index
    %c0_15 = arith.constant 0 : index
    %c0_16 = arith.constant 0 : index
    %14 = vector.load %arg5[%c1_14, %c0_15, %c0_16] : memref<3x1x32xf32, #tpu.memory_space<vmem>>, vector<1x1x32xf32>
    %15 = vector.shape_cast %14 : vector<1x1x32xf32> to vector<1x32xf32>
    %16 = vector.broadcast %15 : vector<1x32xf32> to vector<8x32xf32>
    %17 = arith.addf %13, %16 : vector<8x32xf32>
    %c0_17 = arith.constant 0 : index
    %c0_18 = arith.constant 0 : index
    %c0_19 = arith.constant 0 : index
    %18 = vector.load %arg3[%c0_17, %c0_18, %c0_19] : memref<1x8x32xf32, #tpu.memory_space<vmem>>, vector<1x8x32xf32>
    %19 = vector.shape_cast %18 : vector<1x8x32xf32> to vector<8x32xf32>
    %c2 = arith.constant 2 : index
    %c0_20 = arith.constant 0 : index
    %c0_21 = arith.constant 0 : index
    %20 = vector.load %arg4[%c2, %c0_20, %c0_21] : memref<3x32x32xf32, #tpu.memory_space<vmem>>, vector<1x32x32xf32>
    %21 = vector.shape_cast %20 : vector<1x32x32xf32> to vector<32x32xf32>
    %cst_22 = arith.constant dense<0.000000e+00> : vector<8x32xf32>
    %22 = tpu.matmul %19, %21, %cst_22 {dimension_numbers = #tpu.dot_dimension_numbers<[1], [0], [0], [1], [0, 0, 1, 1], [], []>} : vector<8x32xf32>, vector<32x32xf32>, vector<8x32xf32> -> vector<8x32xf32>
    %c2_23 = arith.constant 2 : index
    %c0_24 = arith.constant 0 : index
    %c0_25 = arith.constant 0 : index
    %23 = vector.load %arg5[%c2_23, %c0_24, %c0_25] : memref<3x1x32xf32, #tpu.memory_space<vmem>>, vector<1x1x32xf32>
    %24 = vector.shape_cast %23 : vector<1x1x32xf32> to vector<1x32xf32>
    %25 = vector.broadcast %24 : vector<1x32xf32> to vector<8x32xf32>
    %26 = arith.addf %22, %25 : vector<8x32xf32>
    %27 = vector.extract_strided_slice %8 {offsets = [0, 0], sizes = [8, 8], strides = [1, 1]} : vector<8x32xf32> to vector<8x8xf32>
    %cst_26 = arith.constant 0.353553385 : f32
    %28 = vector.broadcast %cst_26 : f32 to vector<8x8xf32>
    %29 = arith.mulf %27, %28 : vector<8x8xf32>
    %30 = vector.extract_strided_slice %17 {offsets = [0, 0], sizes = [8, 8], strides = [1, 1]} : vector<8x32xf32> to vector<8x8xf32>
    %31 = vector.extract_strided_slice %26 {offsets = [0, 0], sizes = [8, 8], strides = [1, 1]} : vector<8x32xf32> to vector<8x8xf32>
    %cst_27 = arith.constant dense<0.000000e+00> : vector<8x8xf32>
    %32 = tpu.matmul %29, %30, %cst_27 {dimension_numbers = #tpu.dot_dimension_numbers<[1], [1], [0], [0], [0, 0, 1, 0], [], []>} : vector<8x8xf32>, vector<8x8xf32>, vector<8x8xf32> -> vector<8x8xf32>
    %cst_28 = arith.constant dense<0xFF800000> : vector<8xf32>
    %33 = vector.multi_reduction <maximumf>, %32, %cst_28 [1] : vector<8x8xf32> to vector<8xf32>
    %34 = vector.shape_cast %33 : vector<8xf32> to vector<8x1xf32>
    %35 = vector.broadcast %34 : vector<8x1xf32> to vector<8x8xf32>
    %36 = arith.subf %32, %35 : vector<8x8xf32>
    %37 = math.exp %36 : vector<8x8xf32>
    %cst_29 = arith.constant dense<0.000000e+00> : vector<8xf32>
    %38 = vector.multi_reduction <add>, %37, %cst_29 [1] : vector<8x8xf32> to vector<8xf32>
    %39 = vector.shape_cast %38 : vector<8xf32> to vector<8x1xf32>
    %40 = tpu.reciprocal %39 {approx = true} : vector<8x1xf32> -> vector<8x1xf32>
    %41 = vector.broadcast %40 : vector<8x1xf32> to vector<8x8xf32>
    %42 = arith.mulf %37, %41 : vector<8x8xf32>
    %cst_30 = arith.constant dense<0.000000e+00> : vector<8x8xf32>
    %43 = tpu.matmul %42, %31, %cst_30 {dimension_numbers = #tpu.dot_dimension_numbers<[1], [0], [0], [1], [0, 0, 1, 1], [], []>} : vector<8x8xf32>, vector<8x8xf32>, vector<8x8xf32> -> vector<8x8xf32>
    %44 = vector.extract_strided_slice %8 {offsets = [0, 8], sizes = [8, 8], strides = [1, 1]} : vector<8x32xf32> to vector<8x8xf32>
    %cst_31 = arith.constant 0.353553385 : f32
    %45 = vector.broadcast %cst_31 : f32 to vector<8x8xf32>
    %46 = arith.mulf %44, %45 : vector<8x8xf32>
    %47 = vector.extract_strided_slice %17 {offsets = [0, 8], sizes = [8, 8], strides = [1, 1]} : vector<8x32xf32> to vector<8x8xf32>
    %48 = vector.extract_strided_slice %26 {offsets = [0, 8], sizes = [8, 8], strides = [1, 1]} : vector<8x32xf32> to vector<8x8xf32>
    %cst_32 = arith.constant dense<0.000000e+00> : vector<8x8xf32>
    %49 = tpu.matmul %46, %47, %cst_32 {dimension_numbers = #tpu.dot_dimension_numbers<[1], [1], [0], [0], [0, 0, 1, 0], [], []>} : vector<8x8xf32>, vector<8x8xf32>, vector<8x8xf32> -> vector<8x8xf32>
    %cst_33 = arith.constant dense<0xFF800000> : vector<8xf32>
    %50 = vector.multi_reduction <maximumf>, %49, %cst_33 [1] : vector<8x8xf32> to vector<8xf32>
    %51 = vector.shape_cast %50 : vector<8xf32> to vector<8x1xf32>
    %52 = vector.broadcast %51 : vector<8x1xf32> to vector<8x8xf32>
    %53 = arith.subf %49, %52 : vector<8x8xf32>
    %54 = math.exp %53 : vector<8x8xf32>
    %cst_34 = arith.constant dense<0.000000e+00> : vector<8xf32>
    %55 = vector.multi_reduction <add>, %54, %cst_34 [1] : vector<8x8xf32> to vector<8xf32>
    %56 = vector.shape_cast %55 : vector<8xf32> to vector<8x1xf32>
    %57 = tpu.reciprocal %56 {approx = true} : vector<8x1xf32> -> vector<8x1xf32>
    %58 = vector.broadcast %57 : vector<8x1xf32> to vector<8x8xf32>
    %59 = arith.mulf %54, %58 : vector<8x8xf32>
    %cst_35 = arith.constant dense<0.000000e+00> : vector<8x8xf32>
    %60 = tpu.matmul %59, %48, %cst_35 {dimension_numbers = #tpu.dot_dimension_numbers<[1], [0], [0], [1], [0, 0, 1, 1], [], []>} : vector<8x8xf32>, vector<8x8xf32>, vector<8x8xf32> -> vector<8x8xf32>
    %61 = vector.extract_strided_slice %8 {offsets = [0, 16], sizes = [8, 8], strides = [1, 1]} : vector<8x32xf32> to vector<8x8xf32>
    %cst_36 = arith.constant 0.353553385 : f32
    %62 = vector.broadcast %cst_36 : f32 to vector<8x8xf32>
    %63 = arith.mulf %61, %62 : vector<8x8xf32>
    %64 = vector.extract_strided_slice %17 {offsets = [0, 16], sizes = [8, 8], strides = [1, 1]} : vector<8x32xf32> to vector<8x8xf32>
    %65 = vector.extract_strided_slice %26 {offsets = [0, 16], sizes = [8, 8], strides = [1, 1]} : vector<8x32xf32> to vector<8x8xf32>
    %cst_37 = arith.constant dense<0.000000e+00> : vector<8x8xf32>
    %66 = tpu.matmul %63, %64, %cst_37 {dimension_numbers = #tpu.dot_dimension_numbers<[1], [1], [0], [0], [0, 0, 1, 0], [], []>} : vector<8x8xf32>, vector<8x8xf32>, vector<8x8xf32> -> vector<8x8xf32>
    %cst_38 = arith.constant dense<0xFF800000> : vector<8xf32>
    %67 = vector.multi_reduction <maximumf>, %66, %cst_38 [1] : vector<8x8xf32> to vector<8xf32>
    %68 = vector.shape_cast %67 : vector<8xf32> to vector<8x1xf32>
    %69 = vector.broadcast %68 : vector<8x1xf32> to vector<8x8xf32>
    %70 = arith.subf %66, %69 : vector<8x8xf32>
    %71 = math.exp %70 : vector<8x8xf32>
    %cst_39 = arith.constant dense<0.000000e+00> : vector<8xf32>
    %72 = vector.multi_reduction <add>, %71, %cst_39 [1] : vector<8x8xf32> to vector<8xf32>
    %73 = vector.shape_cast %72 : vector<8xf32> to vector<8x1xf32>
    %74 = tpu.reciprocal %73 {approx = true} : vector<8x1xf32> -> vector<8x1xf32>
    %75 = vector.broadcast %74 : vector<8x1xf32> to vector<8x8xf32>
    %76 = arith.mulf %71, %75 : vector<8x8xf32>
    %cst_40 = arith.constant dense<0.000000e+00> : vector<8x8xf32>
    %77 = tpu.matmul %76, %65, %cst_40 {dimension_numbers = #tpu.dot_dimension_numbers<[1], [0], [0], [1], [0, 0, 1, 1], [], []>} : vector<8x8xf32>, vector<8x8xf32>, vector<8x8xf32> -> vector<8x8xf32>
    %78 = vector.extract_strided_slice %8 {offsets = [0, 24], sizes = [8, 8], strides = [1, 1]} : vector<8x32xf32> to vector<8x8xf32>
    %cst_41 = arith.constant 0.353553385 : f32
    %79 = vector.broadcast %cst_41 : f32 to vector<8x8xf32>
    %80 = arith.mulf %78, %79 : vector<8x8xf32>
    %81 = vector.extract_strided_slice %17 {offsets = [0, 24], sizes = [8, 8], strides = [1, 1]} : vector<8x32xf32> to vector<8x8xf32>
    %82 = vector.extract_strided_slice %26 {offsets = [0, 24], sizes = [8, 8], strides = [1, 1]} : vector<8x32xf32> to vector<8x8xf32>
    %cst_42 = arith.constant dense<0.000000e+00> : vector<8x8xf32>
    %83 = tpu.matmul %80, %81, %cst_42 {dimension_numbers = #tpu.dot_dimension_numbers<[1], [1], [0], [0], [0, 0, 1, 0], [], []>} : vector<8x8xf32>, vector<8x8xf32>, vector<8x8xf32> -> vector<8x8xf32>
    %cst_43 = arith.constant dense<0xFF800000> : vector<8xf32>
    %84 = vector.multi_reduction <maximumf>, %83, %cst_43 [1] : vector<8x8xf32> to vector<8xf32>
    %85 = vector.shape_cast %84 : vector<8xf32> to vector<8x1xf32>
    %86 = vector.broadcast %85 : vector<8x1xf32> to vector<8x8xf32>
    %87 = arith.subf %83, %86 : vector<8x8xf32>
    %88 = math.exp %87 : vector<8x8xf32>
    %cst_44 = arith.constant dense<0.000000e+00> : vector<8xf32>
    %89 = vector.multi_reduction <add>, %88, %cst_44 [1] : vector<8x8xf32> to vector<8xf32>
    %90 = vector.shape_cast %89 : vector<8xf32> to vector<8x1xf32>
    %91 = tpu.reciprocal %90 {approx = true} : vector<8x1xf32> -> vector<8x1xf32>
    %92 = vector.broadcast %91 : vector<8x1xf32> to vector<8x8xf32>
    %93 = arith.mulf %88, %92 : vector<8x8xf32>
    %cst_45 = arith.constant dense<0.000000e+00> : vector<8x8xf32>
    %94 = tpu.matmul %93, %82, %cst_45 {dimension_numbers = #tpu.dot_dimension_numbers<[1], [0], [0], [1], [0, 0, 1, 1], [], []>} : vector<8x8xf32>, vector<8x8xf32>, vector<8x8xf32> -> vector<8x8xf32>
    %95 = tpu.concatenate %43, %60, %77, %94 in 1 : vector<8x8xf32>, vector<8x8xf32>, vector<8x8xf32>, vector<8x8xf32> -> vector<8x32xf32>
    %c0_46 = arith.constant 0 : index
    %c0_47 = arith.constant 0 : index
    %96 = vector.load %arg6[%c0_46, %c0_47] : memref<32x32xf32, #tpu.memory_space<vmem>>, vector<32x32xf32>
    %cst_48 = arith.constant dense<0.000000e+00> : vector<8x32xf32>
    %97 = tpu.matmul %95, %96, %cst_48 {dimension_numbers = #tpu.dot_dimension_numbers<[1], [0], [0], [1], [0, 0, 1, 1], [], []>} : vector<8x32xf32>, vector<32x32xf32>, vector<8x32xf32> -> vector<8x32xf32>
    %c0_49 = arith.constant 0 : index
    %c0_50 = arith.constant 0 : index
    %98 = vector.load %arg7[%c0_49, %c0_50] : memref<1x32xf32, #tpu.memory_space<vmem>>, vector<1x32xf32>
    %99 = vector.broadcast %98 : vector<1x32xf32> to vector<8x32xf32>
    %100 = arith.addf %97, %99 : vector<8x32xf32>
    %c0_51 = arith.constant 0 : index
    %c0_52 = arith.constant 0 : index
    %c0_53 = arith.constant 0 : index
    %101 = vector.load %arg8[%c0_51, %c0_52, %c0_53] : memref<1x8x32xf32, #tpu.memory_space<vmem>>, vector<1x8x32xf32>
    %102 = vector.shape_cast %101 : vector<1x8x32xf32> to vector<8x32xf32>
    %103 = vector.shape_cast %100 : vector<8x32xf32> to vector<1x8x32xf32>
    tpu.vector_store %arg8[%c0_51, %c0_52, %c0_53], %103 {strides = array<i32>} : memref<1x8x32xf32, #tpu.memory_space<vmem>>, vector<1x8x32xf32>,
    %104 = vector.shape_cast %42 : vector<8x8xf32> to vector<1x8x8xf32>
    %105 = vector.shape_cast %59 : vector<8x8xf32> to vector<1x8x8xf32>
    %106 = vector.shape_cast %76 : vector<8x8xf32> to vector<1x8x8xf32>
    %107 = vector.shape_cast %93 : vector<8x8xf32> to vector<1x8x8xf32>
    %108 = tpu.concatenate %104, %105, %106, %107 in 0 : vector<1x8x8xf32>, vector<1x8x8xf32>, vector<1x8x8xf32>, vector<1x8x8xf32> -> vector<4x8x8xf32>
    %c0_54 = arith.constant 0 : index
    %c0_55 = arith.constant 0 : index
    %c0_56 = arith.constant 0 : index
    %c0_57 = arith.constant 0 : index
    %109 = vector.load %arg9[%c0_54, %c0_55, %c0_56, %c0_57] : memref<1x4x8x8xf32, #tpu.memory_space<vmem>>, vector<1x4x8x8xf32>
    %110 = vector.shape_cast %109 : vector<1x4x8x8xf32> to vector<4x8x8xf32>
    %111 = vector.shape_cast %108 : vector<4x8x8xf32> to vector<1x4x8x8xf32>
    tpu.vector_store %arg9[%c0_54, %c0_55, %c0_56, %c0_57], %111 {strides = array<i32>} : memref<1x4x8x8xf32, #tpu.memory_space<vmem>>, vector<1x4x8x8xf32>,
    return
  }
  func.func @transform_0(%arg0: i32) -> (i32, i32, i32) {
    %c0_i32 = arith.constant 0 : i32
    %c0_i32_0 = arith.constant 0 : i32
    %c0_i32_1 = arith.constant 0 : i32
    return %arg0, %c0_i32, %c0_i32_0 : i32, i32, i32
  }
  func.func @transform_1(%arg0: i32) -> (i32, i32, i32) {
    %c0_i32 = arith.constant 0 : i32
    %c0_i32_0 = arith.constant 0 : i32
    %c0_i32_1 = arith.constant 0 : i32
    return %arg0, %c0_i32, %c0_i32_0 : i32, i32, i32
  }
  func.func @transform_2(%arg0: i32) -> (i32, i32, i32) {
    %c0_i32 = arith.constant 0 : i32
    %c0_i32_0 = arith.constant 0 : i32
    %c0_i32_1 = arith.constant 0 : i32
    return %arg0, %c0_i32, %c0_i32_0 : i32, i32, i32
  }
  func.func @transform_3(%arg0: i32) -> (i32, i32, i32) {
    %c0_i32 = arith.constant 0 : i32
    %c0_i32_0 = arith.constant 0 : i32
    %c0_i32_1 = arith.constant 0 : i32
    %c0_i32_2 = arith.constant 0 : i32
    return %c0_i32, %c0_i32_0, %c0_i32_1 : i32, i32, i32
  }
  func.func @transform_4(%arg0: i32) -> (i32, i32, i32) {
    %c0_i32 = arith.constant 0 : i32
    %c0_i32_0 = arith.constant 0 : i32
    %c0_i32_1 = arith.constant 0 : i32
    %c0_i32_2 = arith.constant 0 : i32
    return %c0_i32, %c0_i32_0, %c0_i32_1 : i32, i32, i32
  }
  func.func @transform_5(%arg0: i32) -> (i32, i32) {
    %c0_i32 = arith.constant 0 : i32
    %c0_i32_0 = arith.constant 0 : i32
    %c0_i32_1 = arith.constant 0 : i32
    return %c0_i32, %c0_i32_0 : i32, i32
  }
  func.func @transform_6(%arg0: i32) -> (i32, i32) {
    %c0_i32 = arith.constant 0 : i32
    %c0_i32_0 = arith.constant 0 : i32
    %c0_i32_1 = arith.constant 0 : i32
    return %c0_i32, %c0_i32_0 : i32, i32
  }
  func.func @transform_7(%arg0: i32) -> (i32, i32, i32) {
    %c0_i32 = arith.constant 0 : i32
    %c0_i32_0 = arith.constant 0 : i32
    %c0_i32_1 = arith.constant 0 : i32
    return %arg0, %c0_i32, %c0_i32_0 : i32, i32, i32
  }
  func.func @transform_8(%arg0: i32) -> (i32, i32, i32, i32) {
    %c0_i32 = arith.constant 0 : i32
    %c0_i32_0 = arith.constant 0 : i32
    %c0_i32_1 = arith.constant 0 : i32
    %c0_i32_2 = arith.constant 0 : i32
    return %arg0, %c0_i32, %c0_i32_0, %c0_i32_1 : i32, i32, i32, i32
  }
}

</mosaic_0001>

<llo_original>
// kernel: tpu_custom_call.1
$region0: #{tpu_custom_call.1}
  #allocation0 [shape = 'u32[]', space=smem, size = 0x4, offset = 0x4, fixed_abs, tag = 'smem constant byte address 0x4 - core index']
  #allocation1 [shape = 'u32[144,128]{1,0:T(1,128)}', space=vmem, size = 0x12000, scoped, tag = 'internal scratch']
  %s0 = inlined_call_operand.hbm [shape: f32[2,8,32], index: 0, kind: input, shape index: {}]
  %s1 = inlined_call_operand.hbm [shape: f32[2,8,32], index: 1, kind: input, shape index: {}]
  %s2 = inlined_call_operand.hbm [shape: f32[2,8,32], index: 2, kind: input, shape index: {}]
  %s3 = inlined_call_operand.hbm [shape: f32[3,32,32], index: 3, kind: input, shape index: {}]
  %s4 = inlined_call_operand.vmem [shape: f32[3,1,32], index: 4, kind: input, shape index: {}]
  %s5 = inlined_call_operand.hbm [shape: f32[32,32], index: 5, kind: input, shape index: {}]
  %s6 = inlined_call_operand.vmem [shape: f32[1,32], index: 6, kind: input, shape index: {}]
  %s7 = inlined_call_operand.hbm [shape: f32[2,8,32], index: 7, kind: output, shape index: {0}]
  %s8 = inlined_call_operand.hbm [shape: f32[2,4,8,8], index: 8, kind: output, shape index: {1}]
  %9 = xla_tuple %s7, %s8
  %s10 = sld [smem:[#allocation0]]
  $region89: #{tpu_custom_call.1} parent=0
    _
  %s12 = ssub.s32 1, %s10
  %s13 = scalar_select 0, %s12, %s10
  $region1: #{tpu_custom_call.1} parent=0
    #allocation2 [shape = 'u8[8192]{0}', space=vmem, size = 0x2000, scoped, tag = 'input window, operand 0']
    #allocation3 [shape = 's32[2]{0}', space=sflag, size = 0x8, scoped, tag = 'scoped memory for tpu_custom_call.1']
    #allocation4 [shape = 's32[2]{0}', space=sflag, size = 0x8, scoped, tag = 'scoped memory for tpu_custom_call.1']
    #allocation5 [shape = 'u8[8192]{0}', space=vmem, size = 0x2000, scoped, tag = 'input window, operand 1']
    #allocation6 [shape = 's32[2]{0}', space=sflag, size = 0x8, scoped, tag = 'scoped memory for tpu_custom_call.1']
    #allocation7 [shape = 'u8[8192]{0}', space=vmem, size = 0x2000, scoped, tag = 'input window, operand 2']
    #allocation8 [shape = 'u8[49152]{0}', space=vmem, size = 0xc000, scoped, tag = 'input window, operand 3, single buffered']
    #allocation9 [shape = 's32[1]{0}', space=sflag, size = 0x4, scoped, tag = 'scoped memory for tpu_custom_call.1']
    #allocation10 [shape = 'u8[16384]{0}', space=vmem, size = 0x4000, scoped, tag = 'input window, operand 5, single buffered']
    #allocation11 [shape = 'u8[8192]{0}', space=vmem, size = 0x2000, scoped, tag = 'output window, operand 0']
    #allocation12 [shape = 'u8[32768]{0}', space=vmem, size = 0x8000, scoped, tag = 'output window, operand 1']
    #allocation13 [shape = 's32[2]{0}', space=sflag, size = 0x8, scoped, tag = 'scoped memory for tpu_custom_call.1']
    %14 = vsyncpa [#allocation3], 0
    %s15 = scalar_lea.sflag [#allocation3], 1
    %16 = vsyncpa %s15, 0
    %17 = vsyncpa [#allocation6], 0
    %s18 = scalar_lea.sflag [#allocation6], 1
    %19 = vsyncpa %s18, 0
    %20 = vsyncpa [#allocation9], 0
    %21 = vsyncpa [#allocation4], 0
    %s22 = scalar_lea.sflag [#allocation4], 1
    %23 = vsyncpa %s22, 0
    %24 = vsyncpa [#allocation13], 0
    %s25 = scalar_lea.sflag [#allocation13], 1
    %26 = vsyncpa %s25, 0
    loop: start=0, step=1, limit=4
    $region2: #{tpu_custom_call.1} parent=1 // loop_pre_header
      _
    $region3: #{tpu_custom_call.1} parent=1 // loop_header
      %s28 = sphi 0, %s32
      %p29 = scmp.ge.s32.totalorder %s28, 4
      %s38 = sphi 0, %s40
      %s41 = sphi 0, %s38
      %s42 = sphi 0, %s41
      %s58 = sphi 0, %s42
      %s64 = sphi 0, %s66
      %s67 = sphi 0, %s64
      %s68 = sphi 0, %s67
      %s84 = sphi 0, %s68
      %s90 = sphi 0, %s92
      %s93 = sphi 0, %s90
      %s94 = sphi 0, %s93
      %s110 = sphi 0, %s94
      %s114 = sphi 0, %s114
      %s116 = sphi 0, %s114
      %s117 = sphi 0, %s116
      %s131 = sphi 0, %s117
      %s135 = sphi 0, %s135
      %s137 = sphi 0, %s135
      %s138 = sphi 0, %s137
      %s152 = sphi 0, %s138
      %s156 = sphi 0, %s156
      %s158 = sphi 0, %s156
      %s159 = sphi 0, %s158
      %s173 = sphi 0, %s159
      %s177 = sphi 0, %s177
      %s179 = sphi 0, %s177
      %s180 = sphi 0, %s179
      %s194 = sphi 0, %s180
      %s200 = sphi 0, %s202
      %s203 = sphi 0, %s200
      %s204 = sphi 0, %s203
      %s220 = sphi 0, %s204
      %s226 = sphi 0, %s228
      %s229 = sphi 0, %s226
      %s230 = sphi 0, %s229
      %s246 = sphi 0, %s230
    $region4: #{tpu_custom_call.1} parent=1 // loop_header_branch
      %31 = sbr.rel (%p29) target = $region8
    $region5: #{tpu_custom_call.1} parent=1 // loop_body
      %s33 = ssub.s32 %s28, 1
      %s34 = ssub.s32 %s28, 2
      %s35 = sadd.s32 %s28, 1
      %s36 = ssub.s32 %s28, %s35
      %p37 = scmp.eq.s32.totalorder %s36, 0
      %s39 = sadd.s32 %s38, 1
      %s40 = scalar_select %p37, %s38, %s39
      %p43 = pneg %p37
      %p44 = scmp.eq.s32.totalorder %s28, 1
      %p45 = por %p43, %p44
      %p46 = scmp.ne.s32.totalorder %s38, %s41
      %p47 = scmp.eq.s32.totalorder %s28, 0
      %p48 = por %p46, %p47
      %p49 = scmp.ne.s32.totalorder %s38, %s41
      %p50 = scmp.eq.s32.totalorder %s33, 1
      %p51 = por %p49, %p50
      %p52 = scmp.ne.s32.totalorder %s41, %s42
      %p53 = scmp.eq.s32.totalorder %s33, 0
      %p54 = por %p52, %p53
      %p55 = scmp.ne.s32.totalorder %s41, %s42
      %p56 = scmp.eq.s32.totalorder %s34, 1
      %p57 = por %p55, %p56
      %p59 = scmp.ne.s32.totalorder %s42, %s58
      %p60 = scmp.eq.s32.totalorder %s34, 0
      %p61 = por %p59, %p60
      %s62 = ssub.s32 %s28, %s35
      %p63 = scmp.eq.s32.totalorder %s62, 0
      %s65 = sadd.s32 %s64, 1
      %s66 = scalar_select %p63, %s64, %s65
      %p69 = pneg %p63
      %p70 = scmp.eq.s32.totalorder %s28, 1
      %p71 = por %p69, %p70
      %p72 = scmp.ne.s32.totalorder %s64, %s67
      %p73 = scmp.eq.s32.totalorder %s28, 0
      %p74 = por %p72, %p73
      %p75 = scmp.ne.s32.totalorder %s64, %s67
      %p76 = scmp.eq.s32.totalorder %s33, 1
      %p77 = por %p75, %p76
      %p78 = scmp.ne.s32.totalorder %s67, %s68
      %p79 = scmp.eq.s32.totalorder %s33, 0
      %p80 = por %p78, %p79
      %p81 = scmp.ne.s32.totalorder %s67, %s68
      %p82 = scmp.eq.s32.totalorder %s34, 1
      %p83 = por %p81, %p82
      %p85 = scmp.ne.s32.totalorder %s68, %s84
      %p86 = scmp.eq.s32.totalorder %s34, 0
      %p87 = por %p85, %p86
      %s88 = ssub.s32 %s28, %s35
      %p89 = scmp.eq.s32.totalorder %s88, 0
      %s91 = sadd.s32 %s90, 1
      %s92 = scalar_select %p89, %s90, %s91
      %p95 = pneg %p89
      %p96 = scmp.eq.s32.totalorder %s28, 1
      %p97 = por %p95, %p96
      %p98 = scmp.ne.s32.totalorder %s90, %s93
      %p99 = scmp.eq.s32.totalorder %s28, 0
      %p100 = por %p98, %p99
      %p101 = scmp.ne.s32.totalorder %s90, %s93
      %p102 = scmp.eq.s32.totalorder %s33, 1
      %p103 = por %p101, %p102
      %p104 = scmp.ne.s32.totalorder %s93, %s94
      %p105 = scmp.eq.s32.totalorder %s33, 0
      %p106 = por %p104, %p105
      %p107 = scmp.ne.s32.totalorder %s93, %s94
      %p108 = scmp.eq.s32.totalorder %s34, 1
      %p109 = por %p107, %p108
      %p111 = scmp.ne.s32.totalorder %s94, %s110
      %p112 = scmp.eq.s32.totalorder %s34, 0
      %p113 = por %p111, %p112
      %s115 = sadd.s32 %s114, 1
      %p118 = scmp.eq.s32.totalorder %s28, 1
      %p119 = scmp.ne.s32.totalorder %s114, %s116
      %p120 = scmp.eq.s32.totalorder %s28, 0
      %p121 = por %p119, %p120
      %p122 = scmp.ne.s32.totalorder %s114, %s116
      %p123 = scmp.eq.s32.totalorder %s33, 1
      %p124 = por %p122, %p123
      %p125 = scmp.ne.s32.totalorder %s116, %s117
      %p126 = scmp.eq.s32.totalorder %s33, 0
      %p127 = por %p125, %p126
      %p128 = scmp.ne.s32.totalorder %s116, %s117
      %p129 = scmp.eq.s32.totalorder %s34, 1
      %p130 = por %p128, %p129
      %p132 = scmp.ne.s32.totalorder %s117, %s131
      %p133 = scmp.eq.s32.totalorder %s34, 0
      %p134 = por %p132, %p133
      %s136 = sadd.s32 %s135, 1
      %p139 = scmp.eq.s32.totalorder %s28, 1
      %p140 = scmp.ne.s32.totalorder %s135, %s137
      %p141 = scmp.eq.s32.totalorder %s28, 0
      %p142 = por %p140, %p141
      %p143 = scmp.ne.s32.totalorder %s135, %s137
      %p144 = scmp.eq.s32.totalorder %s33, 1
      %p145 = por %p143, %p144
      %p146 = scmp.ne.s32.totalorder %s137, %s138
      %p147 = scmp.eq.s32.totalorder %s33, 0
      %p148 = por %p146, %p147
      %p149 = scmp.ne.s32.totalorder %s137, %s138
      %p150 = scmp.eq.s32.totalorder %s34, 1
      %p151 = por %p149, %p150
      %p153 = scmp.ne.s32.totalorder %s138, %s152
      %p154 = scmp.eq.s32.totalorder %s34, 0
      %p155 = por %p153, %p154
      %s157 = sadd.s32 %s156, 1
      %p160 = scmp.eq.s32.totalorder %s28, 1
      %p161 = scmp.ne.s32.totalorder %s156, %s158
      %p162 = scmp.eq.s32.totalorder %s28, 0
      %p163 = por %p161, %p162
      %p164 = scmp.ne.s32.totalorder %s156, %s158
      %p165 = scmp.eq.s32.totalorder %s33, 1
      %p166 = por %p164, %p165
      %p167 = scmp.ne.s32.totalorder %s158, %s159
      %p168 = scmp.eq.s32.totalorder %s33, 0
      %p169 = por %p167, %p168
      %p170 = scmp.ne.s32.totalorder %s158, %s159
      %p171 = scmp.eq.s32.totalorder %s34, 1
      %p172 = por %p170, %p171
      %p174 = scmp.ne.s32.totalorder %s159, %s173
      %p175 = scmp.eq.s32.totalorder %s34, 0
      %p176 = por %p174, %p175
      %s178 = sadd.s32 %s177, 1
      %p181 = scmp.eq.s32.totalorder %s28, 1
      %p182 = scmp.ne.s32.totalorder %s177, %s179
      %p183 = scmp.eq.s32.totalorder %s28, 0
      %p184 = por %p182, %p183
      %p185 = scmp.ne.s32.totalorder %s177, %s179
      %p186 = scmp.eq.s32.totalorder %s33, 1
      %p187 = por %p185, %p186
      %p188 = scmp.ne.s32.totalorder %s179, %s180
      %p189 = scmp.eq.s32.totalorder %s33, 0
      %p190 = por %p188, %p189
      %p191 = scmp.ne.s32.totalorder %s179, %s180
      %p192 = scmp.eq.s32.totalorder %s34, 1
      %p193 = por %p191, %p192
      %p195 = scmp.ne.s32.totalorder %s180, %s194
      %p196 = scmp.eq.s32.totalorder %s34, 0
      %p197 = por %p195, %p196
      %s198 = ssub.s32 %s28, %s35
      %p199 = scmp.eq.s32.totalorder %s198, 0
      %s201 = sadd.s32 %s200, 1
      %s202 = scalar_select %p199, %s200, %s201
      %p205 = pneg %p199
      %p206 = scmp.eq.s32.totalorder %s28, 1
      %p207 = por %p205, %p206
      %p208 = scmp.ne.s32.totalorder %s200, %s203
      %p209 = scmp.eq.s32.totalorder %s28, 0
      %p210 = por %p208, %p209
      %p211 = scmp.ne.s32.totalorder %s200, %s203
      %p212 = scmp.eq.s32.totalorder %s33, 1
      %p213 = por %p211, %p212
      %p214 = scmp.ne.s32.totalorder %s203, %s204
      %p215 = scmp.eq.s32.totalorder %s33, 0
      %p216 = por %p214, %p215
      %p217 = scmp.ne.s32.totalorder %s203, %s204
      %p218 = scmp.eq.s32.totalorder %s34, 1
      %p219 = por %p217, %p218
      %p221 = scmp.ne.s32.totalorder %s204, %s220
      %p222 = scmp.eq.s32.totalorder %s34, 0
      %p223 = por %p221, %p222
      %s224 = ssub.s32 %s28, %s35
      %p225 = scmp.eq.s32.totalorder %s224, 0
      %s227 = sadd.s32 %s226, 1
      %s228 = scalar_select %p225, %s226, %s227
      %p231 = pneg %p225
      %p232 = scmp.eq.s32.totalorder %s28, 1
      %p233 = por %p231, %p232
      %p234 = scmp.ne.s32.totalorder %s226, %s229
      %p235 = scmp.eq.s32.totalorder %s28, 0
      %p236 = por %p234, %p235
      %p237 = scmp.ne.s32.totalorder %s226, %s229
      %p238 = scmp.eq.s32.totalorder %s33, 1
      %p239 = por %p237, %p238
      %p240 = scmp.ne.s32.totalorder %s229, %s230
      %p241 = scmp.eq.s32.totalorder %s33, 0
      %p242 = por %p240, %p241
      %p243 = scmp.ne.s32.totalorder %s229, %s230
      %p244 = scmp.eq.s32.totalorder %s34, 1
      %p245 = por %p243, %p244
      %p247 = scmp.ne.s32.totalorder %s230, %s246
      %p248 = scmp.eq.s32.totalorder %s34, 0
      %p249 = por %p247, %p248
      %p250 = scmp.le.s32.totalorder 1, %s28
      %p251 = scmp.lt.s32.totalorder %s28, 3
      %p252 = pnand %p250, %p251
      %p253 = pneg %p252
      // Predicated region
      $region9: #{tpu_custom_call.1} parent=5 // pred_check
        _
      $region10: #{tpu_custom_call.1} parent=5 // pred_check_branch
        %255 = sbr.rel (%p252) target = $region12
      $region11: #{tpu_custom_call.1} parent=5 // pred_region
        %s256 = ssub.s32 %s28, 1
        // Predicated region
        $region13: #{tpu_custom_call.1} parent=11 // pred_check
          %p257 = pneg %p127
        $region14: #{tpu_custom_call.1} parent=11 // pred_check_branch
          %259 = sbr.rel (%p257) target = $region16
        $region15: #{tpu_custom_call.1} parent=11 // pred_region
          %s261 = ssub.s32 1536, 1536
          %262 = vsyncadd [#allocation9], %s261
          %s263 = sshll.u32 [#allocation8], 4
          %s264 = int_to_ptr.vmem [resolvable:$true] %s263
          %269 = dma.hbm_to_vmem [thread:$0]  %s3, 1536, %s264, [#allocation9], 128, 128, 8
        $region16: #{tpu_custom_call.1} parent=11 // pred_fallthru
          _
        // Predicated region
        $region17: #{tpu_custom_call.1} parent=11 // pred_check
          %p270 = pneg %p148
        $region18: #{tpu_custom_call.1} parent=11 // pred_check_branch
          %272 = sbr.rel (%p270) target = $region20
        $region19: #{tpu_custom_call.1} parent=11 // pred_region
          _
        $region20: #{tpu_custom_call.1} parent=11 // pred_fallthru
          _
        // Predicated region
        $region21: #{tpu_custom_call.1} parent=11 // pred_check
          %p273 = pneg %p169
        $region22: #{tpu_custom_call.1} parent=11 // pred_check_branch
          %275 = sbr.rel (%p273) target = $region24
        $region23: #{tpu_custom_call.1} parent=11 // pred_region
          %s277 = ssub.s32 512, 512
          %278 = vsyncadd [#allocation9], %s277
          %s279 = sshll.u32 [#allocation10], 4
          %s280 = int_to_ptr.vmem [resolvable:$true] %s279
          %285 = dma.hbm_to_vmem [thread:$0]  %s5, 512, %s280, [#allocation9], 128, 128, 8
        $region24: #{tpu_custom_call.1} parent=11 // pred_fallthru
          _
        // Predicated region
        $region25: #{tpu_custom_call.1} parent=11 // pred_check
          %p286 = pneg %p190
        $region26: #{tpu_custom_call.1} parent=11 // pred_check_branch
          %288 = sbr.rel (%p286) target = $region28
        $region27: #{tpu_custom_call.1} parent=11 // pred_region
          _
        $region28: #{tpu_custom_call.1} parent=11 // pred_fallthru
          _
      $region12: #{tpu_custom_call.1} parent=5 // pred_fallthru
        _
      %p289 = scmp.lt.s32.totalorder %s28, 2
      // Predicated region
      $region29: #{tpu_custom_call.1} parent=5 // pred_check
        %p290 = pneg %p289
      $region30: #{tpu_custom_call.1} parent=5 // pred_check_branch
        %292 = sbr.rel (%p290) target = $region32
      $region31: #{tpu_custom_call.1} parent=5 // pred_region
        // Predicated region
        $region33: #{tpu_custom_call.1} parent=31 // pred_check
          %p293 = pneg %p48
        $region34: #{tpu_custom_call.1} parent=31 // pred_check_branch
          %295 = sbr.rel (%p293) target = $region36
        $region35: #{tpu_custom_call.1} parent=31 // pred_region
          %s296 = sand.u32 %s38, 1
          %s297 = scalar_lea.sflag [#allocation3], %s296
          %s298 = sand.u32 %s38, 1
          %s299 = smul.addr %s298, 8
          %s300 = scalar_lea.vmem [#allocation2], %s299
          %s302 = ssub.s32 128, 128
          %303 = vsyncadd %s297, %s302
          %s304 = smul.addr %s28, 128
          %s305 = scalar_lea.hbm %s0, %s304
          %s307 = sshll.u32 %s300, 4
          %s308 = int_to_ptr.vmem [resolvable:$true] %s307
          %310 = dma.hbm_to_vmem [thread:$0]  %s305, 128, %s308, %s297
        $region36: #{tpu_custom_call.1} parent=31 // pred_fallthru
          _
        // Predicated region
        $region37: #{tpu_custom_call.1} parent=31 // pred_check
          %p311 = pneg %p74
        $region38: #{tpu_custom_call.1} parent=31 // pred_check_branch
          %313 = sbr.rel (%p311) target = $region40
        $region39: #{tpu_custom_call.1} parent=31 // pred_region
          %s314 = sand.u32 %s28, 1
          %s315 = scalar_lea.sflag [#allocation6], %s314
          %s316 = sand.u32 %s64, 1
          %s317 = smul.addr %s316, 8
          %s318 = scalar_lea.vmem [#allocation5], %s317
          %s320 = ssub.s32 128, 128
          %321 = vsyncadd %s315, %s320
          %s322 = smul.addr %s28, 128
          %s323 = scalar_lea.hbm %s1, %s322
          %s325 = sshll.u32 %s318, 4
          %s326 = int_to_ptr.vmem [resolvable:$true] %s325
          %328 = dma.hbm_to_vmem [thread:$0]  %s323, 128, %s326, %s315
        $region40: #{tpu_custom_call.1} parent=31 // pred_fallthru
          _
        // Predicated region
        $region41: #{tpu_custom_call.1} parent=31 // pred_check
          %p329 = pneg %p100
        $region42: #{tpu_custom_call.1} parent=31 // pred_check_branch
          %331 = sbr.rel (%p329) target = $region44
        $region43: #{tpu_custom_call.1} parent=31 // pred_region
          %s332 = sand.u32 %s28, 1
          %s333 = scalar_lea.sflag [#allocation6], %s332
          %s334 = sand.u32 %s90, 1
          %s335 = smul.addr %s334, 8
          %s336 = scalar_lea.vmem [#allocation7], %s335
          %s338 = ssub.s32 128, 128
          %339 = vsyncadd %s333, %s338
          %s340 = smul.addr %s28, 128
          %s341 = scalar_lea.hbm %s2, %s340
          %s343 = sshll.u32 %s336, 4
          %s344 = int_to_ptr.vmem [resolvable:$true] %s343
          %346 = dma.hbm_to_vmem [thread:$0]  %s341, 128, %s344, %s333
        $region44: #{tpu_custom_call.1} parent=31 // pred_fallthru
          _
      $region32: #{tpu_custom_call.1} parent=5 // pred_fallthru
        _
      %p347 = scmp.le.s32.totalorder 1, %s28
      %p348 = scmp.lt.s32.totalorder %s28, 3
      %p349 = pnand %p347, %p348
      %p350 = pneg %p349
      // Predicated region
      $region45: #{tpu_custom_call.1} parent=5 // pred_check
        _
      $region46: #{tpu_custom_call.1} parent=5 // pred_check_branch
        %352 = sbr.rel (%p349) target = $region48
      $region47: #{tpu_custom_call.1} parent=5 // pred_region
        %s353 = ssub.s32 %s28, 1
        %s354 = sand.u32 %s41, 1
        %s355 = scalar_lea.sflag [#allocation3], %s354
        %s356 = sand.u32 %s41, 1
        %s357 = smul.addr %s356, 8
        %s358 = scalar_lea.vmem [#allocation2], %s357
        // Predicated region
        $region49: #{tpu_custom_call.1} parent=47 // pred_check
          %p359 = pneg %p54
        $region50: #{tpu_custom_call.1} parent=47 // pred_check_branch
          %361 = sbr.rel (%p359) target = $region52
        $region51: #{tpu_custom_call.1} parent=47 // pred_region
          %362 = dma.done %s355, 128
        $region52: #{tpu_custom_call.1} parent=47 // pred_fallthru
          _
        %s363 = sand.u32 %s33, 1
        %s364 = scalar_lea.sflag [#allocation6], %s363
        %s365 = sand.u32 %s67, 1
        %s366 = smul.addr %s365, 8
        %s367 = scalar_lea.vmem [#allocation5], %s366
        // Predicated region
        $region53: #{tpu_custom_call.1} parent=47 // pred_check
          %p368 = pneg %p80
        $region54: #{tpu_custom_call.1} parent=47 // pred_check_branch
          %370 = sbr.rel (%p368) target = $region56
        $region55: #{tpu_custom_call.1} parent=47 // pred_region
          %371 = dma.done %s364, 128
        $region56: #{tpu_custom_call.1} parent=47 // pred_fallthru
          _
        %s372 = sand.u32 %s33, 1
        %s373 = scalar_lea.sflag [#allocation6], %s372
        %s374 = sand.u32 %s93, 1
        %s375 = smul.addr %s374, 8
        %s376 = scalar_lea.vmem [#allocation7], %s375
        // Predicated region
        $region57: #{tpu_custom_call.1} parent=47 // pred_check
          %p377 = pneg %p106
        $region58: #{tpu_custom_call.1} parent=47 // pred_check_branch
          %379 = sbr.rel (%p377) target = $region60
        $region59: #{tpu_custom_call.1} parent=47 // pred_region
          %380 = dma.done %s373, 128
        $region60: #{tpu_custom_call.1} parent=47 // pred_fallthru
          _
        // Predicated region
        $region61: #{tpu_custom_call.1} parent=47 // pred_check
          %p381 = pneg %p127
        $region62: #{tpu_custom_call.1} parent=47 // pred_check_branch
          %383 = sbr.rel (%p381) target = $region64
        $region63: #{tpu_custom_call.1} parent=47 // pred_region
          %384 = dma.done [#allocation9], 1536
        $region64: #{tpu_custom_call.1} parent=47 // pred_fallthru
          _
        // Predicated region
        $region65: #{tpu_custom_call.1} parent=47 // pred_check
          %p385 = pneg %p169
        $region66: #{tpu_custom_call.1} parent=47 // pred_check_branch
          %387 = sbr.rel (%p385) target = $region68
        $region67: #{tpu_custom_call.1} parent=47 // pred_region
          %388 = dma.done [#allocation9], 512
        $region68: #{tpu_custom_call.1} parent=47 // pred_fallthru
          _
        %s389 = sand.u32 %s41, 1
        %s390 = scalar_lea.sflag [#allocation3], %s389
        %s391 = sand.u32 %s41, 1
        %s392 = smul.addr %s391, 8
        %s393 = scalar_lea.vmem [#allocation2], %s392
        %p394 = pneg %p54
        %p395 = pneg %p51
        %s396 = sand.u32 %s33, 1
        %s397 = scalar_lea.sflag [#allocation6], %s396
        %s398 = sand.u32 %s67, 1
        %s399 = smul.addr %s398, 8
        %s400 = scalar_lea.vmem [#allocation5], %s399
        %p401 = pneg %p80
        %p402 = pneg %p77
        %s403 = sand.u32 %s33, 1
        %s404 = scalar_lea.sflag [#allocation6], %s403
        %s405 = sand.u32 %s93, 1
        %s406 = smul.addr %s405, 8
        %s407 = scalar_lea.vmem [#allocation7], %s406
        %p408 = pneg %p106
        %p409 = pneg %p103
        %p410 = pneg %p127
        %p411 = pneg %p124
        %p412 = pneg %p148
        %p413 = pneg %p145
        %p414 = pneg %p169
        %p415 = pneg %p166
        %p416 = pneg %p190
        %p417 = pneg %p187
        %p418 = pneg %p216
        %p419 = pneg %p213
        %s420 = sand.u32 %s203, 1
        %s421 = scalar_lea.sflag [#allocation4], %s420
        %s422 = sand.u32 %s203, 1
        %s423 = smul.addr %s422, 8
        %s424 = scalar_lea.vmem [#allocation11], %s423
        %p425 = pneg %p242
        %p426 = pneg %p239
        %s427 = sand.u32 %s229, 1
        %s428 = scalar_lea.sflag [#allocation13], %s427
        %s429 = sand.u32 %s229, 1
        %s430 = smul.addr %s429, 32
        %s431 = scalar_lea.vmem [#allocation12], %s430
        %v432 = vld [vmem:[%s358] sm:$0xff]
        %v433 = vld [vmem:[#allocation8] sm:$0xff]
        %v434 = vld [vmem:[#allocation8 + $0x8] sm:$0xff]
        %v435 = vld [vmem:[#allocation8 + $0x10] sm:$0xff]
        %v436 = vld [vmem:[#allocation8 + $0x18] sm:$0xff]
        %v437 = vld [vmem:[%s4] sm:$0x1]
        %v439 = vlaneseq
        %v440 = vshrl.u32 %v439, 7
        %v441 = vsub.s32 0, %v440
        %v442 = vrot.slane %v437, %v441
        %vm444 = vcmask 261120
        %v446 = vsel %vm444, %v432, 0
        %448 = vmatprep.subr.mxu0 0.0
        %449 = vmatpush1.msra.mxu0 0.0
        %450 = vmatprep.subr.mxu0 0.0
        %451 = vmatpush1.msra.mxu0 0.0
        %452 = vmatprep.subr.mxu0 0.0
        %453 = vmatpush1.msra.mxu0 0.0
        %454 = vmatprep.subr.mxu0 0.0
        %455 = vmatpush1.msra.mxu0 0.0
        %456 = vmatprep.subr.mxu0 0.0
        %457 = vmatpush1.msra.mxu0 0.0
        %458 = vmatprep.subr.mxu0 0.0
        %459 = vmatpush1.msra.mxu0 0.0
        %460 = vmatprep.subr.mxu0 0.0
        %461 = vmatpush1.msra.mxu0 0.0
        %462 = vmatprep.subr.mxu0 0.0
        %463 = vmatpush1.msra.mxu0 0.0
        %464 = vmatprep.subr.mxu0 0.0
        %465 = vmatpush1.msra.mxu0 0.0
        %466 = vmatprep.subr.mxu0 0.0
        %467 = vmatpush1.msra.mxu0 0.0
        %468 = vmatprep.subr.mxu0 0.0
        %469 = vmatpush1.msra.mxu0 0.0
        %470 = vmatprep.subr.mxu0 0.0
        %471 = vmatpush1.msra.mxu0 0.0
        %472 = vmatprep.subr.mxu0 0.0
        %473 = vmatpush1.msra.mxu0 %v436
        %474 = vmatprep.subr.mxu0 0.0
        %475 = vmatpush1.msra.mxu0 %v435
        %476 = vmatprep.subr.mxu0 0.0
        %477 = vmatpush1.msra.mxu0 %v434
        %478 = vmatprep.subr.mxu0 0.0
        %479 = vmatpush1.msra.mxu0 %v433
        %480 = vmatprep.subr.mxu0 0.0
        %481 = vmatpush2.msra.mxu0 0.0
        %482 = vmatprep.subr.mxu0 0.0
        %483 = vmatpush2.msra.mxu0 0.0
        %484 = vmatprep.subr.mxu0 0.0
        %485 = vmatpush2.msra.mxu0 0.0
        %486 = vmatprep.subr.mxu0 0.0
        %487 = vmatpush2.msra.mxu0 0.0
        %488 = vmatprep.subr.mxu0 0.0
        %489 = vmatpush2.msra.mxu0 0.0
        %490 = vmatprep.subr.mxu0 0.0
        %491 = vmatpush2.msra.mxu0 0.0
        %492 = vmatprep.subr.mxu0 0.0
        %493 = vmatpush2.msra.mxu0 0.0
        %494 = vmatprep.subr.mxu0 0.0
        %495 = vmatpush2.msra.mxu0 0.0
        %496 = vmatprep.subr.mxu0 0.0
        %497 = vmatpush2.msra.mxu0 0.0
        %498 = vmatprep.subr.mxu0 0.0
        %499 = vmatpush2.msra.mxu0 0.0
        %500 = vmatprep.subr.mxu0 0.0
        %501 = vmatpush2.msra.mxu0 0.0
        %502 = vmatprep.subr.mxu0 0.0
        %503 = vmatpush2.msra.mxu0 0.0
        %504 = vmatprep.subr.mxu0 0.0
        %505 = vmatpush2.msra.mxu0 0.0
        %506 = vmatprep.subr.mxu0 0.0
        %507 = vmatpush2.msra.mxu0 0.0
        %508 = vmatprep.subr.mxu0 0.0
        %509 = vmatpush2.msra.mxu0 0.0
        %510 = vmatprep.subr.mxu0 0.0
        %511 = vmatpush2.msra.mxu0 0.0
        %512 = vmatprep.mubr.f32.mxu0 0.0
        %513 = vmatmul.mubr.f32.gmra.mxu0 %v446
        %v514 = vpop.f32.mrf.mxu0
        %v515 = vadd.f32 %v442, %v514
        %v516 = vpop.f32.mrf.mxu0
        %517 = vdwg.mxu0
        %v518 = vld [vmem:[%s367] sm:$0xff]
        %s519 = scalar_lea.vmem [#allocation8], 32
        %v520 = vld [vmem:[%s519] sm:$0xff]
        %v521 = vld [vmem:[%s519 + $0x8] sm:$0xff]
        %v522 = vld [vmem:[%s519 + $0x10] sm:$0xff]
        %v523 = vld [vmem:[%s519 + $0x18] sm:$0xff]
        %s524 = scalar_lea.vmem %s4, 1
        %v525 = vld [vmem:[%s524] sm:$0x1]
        %v527 = vlaneseq
        %v528 = vshrl.u32 %v527, 7
        %v529 = vsub.s32 0, %v528
        %v530 = vrot.slane %v525, %v529
        %v533 = vsel %vm444, %v518, 0
        %535 = vmatprep.subr.mxu0 0.0
        %536 = vmatpush1.msra.mxu0 0.0
        %537 = vmatprep.subr.mxu0 0.0
        %538 = vmatpush1.msra.mxu0 0.0
        %539 = vmatprep.subr.mxu0 0.0
        %540 = vmatpush1.msra.mxu0 0.0
        %541 = vmatprep.subr.mxu0 0.0
        %542 = vmatpush1.msra.mxu0 0.0
        %543 = vmatprep.subr.mxu0 0.0
        %544 = vmatpush1.msra.mxu0 0.0
        %545 = vmatprep.subr.mxu0 0.0
        %546 = vmatpush1.msra.mxu0 0.0
        %547 = vmatprep.subr.mxu0 0.0
        %548 = vmatpush1.msra.mxu0 0.0
        %549 = vmatprep.subr.mxu0 0.0
        %550 = vmatpush1.msra.mxu0 0.0
        %551 = vmatprep.subr.mxu0 0.0
        %552 = vmatpush1.msra.mxu0 0.0
        %553 = vmatprep.subr.mxu0 0.0
        %554 = vmatpush1.msra.mxu0 0.0
        %555 = vmatprep.subr.mxu0 0.0
        %556 = vmatpush1.msra.mxu0 0.0
        %557 = vmatprep.subr.mxu0 0.0
        %558 = vmatpush1.msra.mxu0 0.0
        %559 = vmatprep.subr.mxu0 0.0
        %560 = vmatpush1.msra.mxu0 %v523
        %561 = vmatprep.subr.mxu0 0.0
        %562 = vmatpush1.msra.mxu0 %v522
        %563 = vmatprep.subr.mxu0 0.0
        %564 = vmatpush1.msra.mxu0 %v521
        %565 = vmatprep.subr.mxu0 0.0
        %566 = vmatpush1.msra.mxu0 %v520
        %567 = vmatprep.subr.mxu0 0.0
        %568 = vmatpush2.msra.mxu0 0.0
        %569 = vmatprep.subr.mxu0 0.0
        %570 = vmatpush2.msra.mxu0 0.0
        %571 = vmatprep.subr.mxu0 0.0
        %572 = vmatpush2.msra.mxu0 0.0
        %573 = vmatprep.subr.mxu0 0.0
        %574 = vmatpush2.msra.mxu0 0.0
        %575 = vmatprep.subr.mxu0 0.0
        %576 = vmatpush2.msra.mxu0 0.0
        %577 = vmatprep.subr.mxu0 0.0
        %578 = vmatpush2.msra.mxu0 0.0
        %579 = vmatprep.subr.mxu0 0.0
        %580 = vmatpush2.msra.mxu0 0.0
        %581 = vmatprep.subr.mxu0 0.0
        %582 = vmatpush2.msra.mxu0 0.0
        %583 = vmatprep.subr.mxu0 0.0
        %584 = vmatpush2.msra.mxu0 0.0
        %585 = vmatprep.subr.mxu0 0.0
        %586 = vmatpush2.msra.mxu0 0.0
        %587 = vmatprep.subr.mxu0 0.0
        %588 = vmatpush2.msra.mxu0 0.0
        %589 = vmatprep.subr.mxu0 0.0
        %590 = vmatpush2.msra.mxu0 0.0
        %591 = vmatprep.subr.mxu0 0.0
        %592 = vmatpush2.msra.mxu0 0.0
        %593 = vmatprep.subr.mxu0 0.0
        %594 = vmatpush2.msra.mxu0 0.0
        %595 = vmatprep.subr.mxu0 0.0
        %596 = vmatpush2.msra.mxu0 0.0
        %597 = vmatprep.subr.mxu0 0.0
        %598 = vmatpush2.msra.mxu0 0.0
        %599 = vmatprep.mubr.f32.mxu0 0.0
        %600 = vmatmul.mubr.f32.gmra.mxu0 %v533
        %v601 = vpop.f32.mrf.mxu0
        %v602 = vadd.f32 %v530, %v601
        %v603 = vpop.f32.mrf.mxu0
        %604 = vdwg.mxu0
        %v605 = vld [vmem:[%s376] sm:$0xff]
        %s606 = scalar_lea.vmem [#allocation8], 64
        %v607 = vld [vmem:[%s606] sm:$0xff]
        %v608 = vld [vmem:[%s606 + $0x8] sm:$0xff]
        %v609 = vld [vmem:[%s606 + $0x10] sm:$0xff]
        %v610 = vld [vmem:[%s606 + $0x18] sm:$0xff]
        %s611 = scalar_lea.vmem %s4, 2
        %v612 = vld [vmem:[%s611] sm:$0x1]
        %v614 = vlaneseq
        %v615 = vshrl.u32 %v614, 7
        %v616 = vsub.s32 0, %v615
        %v617 = vrot.slane %v612, %v616
        %v620 = vsel %vm444, %v605, 0
        %622 = vmatprep.subr.mxu0 0.0
        %623 = vmatpush1.msra.mxu0 0.0
        %624 = vmatprep.subr.mxu0 0.0
        %625 = vmatpush1.msra.mxu0 0.0
        %626 = vmatprep.subr.mxu0 0.0
        %627 = vmatpush1.msra.mxu0 0.0
        %628 = vmatprep.subr.mxu0 0.0
        %629 = vmatpush1.msra.mxu0 0.0
        %630 = vmatprep.subr.mxu0 0.0
        %631 = vmatpush1.msra.mxu0 0.0
        %632 = vmatprep.subr.mxu0 0.0
        %633 = vmatpush1.msra.mxu0 0.0
        %634 = vmatprep.subr.mxu0 0.0
        %635 = vmatpush1.msra.mxu0 0.0
        %636 = vmatprep.subr.mxu0 0.0
        %637 = vmatpush1.msra.mxu0 0.0
        %638 = vmatprep.subr.mxu0 0.0
        %639 = vmatpush1.msra.mxu0 0.0
        %640 = vmatprep.subr.mxu0 0.0
        %641 = vmatpush1.msra.mxu0 0.0
        %642 = vmatprep.subr.mxu0 0.0
        %643 = vmatpush1.msra.mxu0 0.0
        %644 = vmatprep.subr.mxu0 0.0
        %645 = vmatpush1.msra.mxu0 0.0
        %646 = vmatprep.subr.mxu0 0.0
        %647 = vmatpush1.msra.mxu0 %v610
        %648 = vmatprep.subr.mxu0 0.0
        %649 = vmatpush1.msra.mxu0 %v609
        %650 = vmatprep.subr.mxu0 0.0
        %651 = vmatpush1.msra.mxu0 %v608
        %652 = vmatprep.subr.mxu0 0.0
        %653 = vmatpush1.msra.mxu0 %v607
        %654 = vmatprep.subr.mxu0 0.0
        %655 = vmatpush2.msra.mxu0 0.0
        %656 = vmatprep.subr.mxu0 0.0
        %657 = vmatpush2.msra.mxu0 0.0
        %658 = vmatprep.subr.mxu0 0.0
        %659 = vmatpush2.msra.mxu0 0.0
        %660 = vmatprep.subr.mxu0 0.0
        %661 = vmatpush2.msra.mxu0 0.0
        %662 = vmatprep.subr.mxu0 0.0
        %663 = vmatpush2.msra.mxu0 0.0
        %664 = vmatprep.subr.mxu0 0.0
        %665 = vmatpush2.msra.mxu0 0.0
        %666 = vmatprep.subr.mxu0 0.0
        %667 = vmatpush2.msra.mxu0 0.0
        %668 = vmatprep.subr.mxu0 0.0
        %669 = vmatpush2.msra.mxu0 0.0
        %670 = vmatprep.subr.mxu0 0.0
        %671 = vmatpush2.msra.mxu0 0.0
        %672 = vmatprep.subr.mxu0 0.0
        %673 = vmatpush2.msra.mxu0 0.0
        %674 = vmatprep.subr.mxu0 0.0
        %675 = vmatpush2.msra.mxu0 0.0
        %676 = vmatprep.subr.mxu0 0.0
        %677 = vmatpush2.msra.mxu0 0.0
        %678 = vmatprep.subr.mxu0 0.0
        %679 = vmatpush2.msra.mxu0 0.0
        %680 = vmatprep.subr.mxu0 0.0
        %681 = vmatpush2.msra.mxu0 0.0
        %682 = vmatprep.subr.mxu0 0.0
        %683 = vmatpush2.msra.mxu0 0.0
        %684 = vmatprep.subr.mxu0 0.0
        %685 = vmatpush2.msra.mxu0 0.0
        %686 = vmatprep.mubr.f32.mxu0 0.0
        %687 = vmatmul.mubr.f32.gmra.mxu0 %v620
        %v688 = vpop.f32.mrf.mxu0
        %v689 = vadd.f32 %v617, %v688
        %v690 = vpop.f32.mrf.mxu0
        %691 = vdwg.mxu0
        %v692 = vmul.f32 %v515, 0.35355338
        %vm693 = vcmask 64512
        %v695 = vsel %vm693, %v692, 0
        %v698 = vsel %vm693, %v602, 0
        %700 = vmatprep.subr.mxu0 0.0
        %701 = vmatpush1.xpose.msra.mxu0 0.0
        %702 = vmatprep.subr.mxu0 0.0
        %703 = vmatpush1.xpose.msra.mxu0 0.0
        %704 = vmatprep.subr.mxu0 0.0
        %705 = vmatpush1.xpose.msra.mxu0 0.0
        %706 = vmatprep.subr.mxu0 0.0
        %707 = vmatpush1.xpose.msra.mxu0 0.0
        %708 = vmatprep.subr.mxu0 0.0
        %709 = vmatpush1.xpose.msra.mxu0 0.0
        %710 = vmatprep.subr.mxu0 0.0
        %711 = vmatpush1.xpose.msra.mxu0 0.0
        %712 = vmatprep.subr.mxu0 0.0
        %713 = vmatpush1.xpose.msra.mxu0 0.0
        %714 = vmatprep.subr.mxu0 0.0
        %715 = vmatpush1.xpose.msra.mxu0 0.0
        %716 = vmatprep.subr.mxu0 0.0
        %717 = vmatpush1.xpose.msra.mxu0 0.0
        %718 = vmatprep.subr.mxu0 0.0
        %719 = vmatpush1.xpose.msra.mxu0 0.0
        %720 = vmatprep.subr.mxu0 0.0
        %721 = vmatpush1.xpose.msra.mxu0 0.0
        %722 = vmatprep.subr.mxu0 0.0
        %723 = vmatpush1.xpose.msra.mxu0 0.0
        %724 = vmatprep.subr.mxu0 0.0
        %725 = vmatpush1.xpose.msra.mxu0 0.0
        %726 = vmatprep.subr.mxu0 0.0
        %727 = vmatpush1.xpose.msra.mxu0 0.0
        %728 = vmatprep.subr.mxu0 0.0
        %729 = vmatpush1.xpose.msra.mxu0 0.0
        %730 = vmatprep.subr.mxu0 0.0
        %731 = vmatpush1.xpose.msra.mxu0 %v698
        %732 = vmatprep.subr.mxu0 0.0
        %733 = vmatpush2.xpose.msra.mxu0 0.0
        %734 = vmatprep.subr.mxu0 0.0
        %735 = vmatpush2.xpose.msra.mxu0 0.0
        %736 = vmatprep.subr.mxu0 0.0
        %737 = vmatpush2.xpose.msra.mxu0 0.0
        %738 = vmatprep.subr.mxu0 0.0
        %739 = vmatpush2.xpose.msra.mxu0 0.0
        %740 = vmatprep.subr.mxu0 0.0
        %741 = vmatpush2.xpose.msra.mxu0 0.0
        %742 = vmatprep.subr.mxu0 0.0
        %743 = vmatpush2.xpose.msra.mxu0 0.0
        %744 = vmatprep.subr.mxu0 0.0
        %745 = vmatpush2.xpose.msra.mxu0 0.0
        %746 = vmatprep.subr.mxu0 0.0
        %747 = vmatpush2.xpose.msra.mxu0 0.0
        %748 = vmatprep.subr.mxu0 0.0
        %749 = vmatpush2.xpose.msra.mxu0 0.0
        %750 = vmatprep.subr.mxu0 0.0
        %751 = vmatpush2.xpose.msra.mxu0 0.0
        %752 = vmatprep.subr.mxu0 0.0
        %753 = vmatpush2.xpose.msra.mxu0 0.0
        %754 = vmatprep.subr.mxu0 0.0
        %755 = vmatpush2.xpose.msra.mxu0 0.0
        %756 = vmatprep.subr.mxu0 0.0
        %757 = vmatpush2.xpose.msra.mxu0 0.0
        %758 = vmatprep.subr.mxu0 0.0
        %759 = vmatpush2.xpose.msra.mxu0 0.0
        %760 = vmatprep.subr.mxu0 0.0
        %761 = vmatpush2.xpose.msra.mxu0 0.0
        %762 = vmatprep.subr.mxu0 0.0
        %763 = vmatpush2.xpose.msra.mxu0 0.0
        %764 = vmatprep.mubr.f32.mxu0 0.0
        %765 = vmatmul.mubr.f32.gmra.mxu0 %v695
        %v766 = vpop.f32.mrf.mxu0
        %v767 = vadd.f32 0.0, %v766
        %v768 = vpop.f32.mrf.mxu0
        %769 = vdwg.mxu0
        %v770 = vsel %vm693, %v767, -inf
        %771 = vmax.xlane.f32.xlu0 %v770
        %v772 = vpop.xlane.xlu0 %771
        %v773 = vsub.f32 %v767, %v772
        %v774 = vmul.f32 %v773, 1.442695
        %v775 = vpow.pop %v774
        %v776 = vsel %vm693, %v775, 0.0
        %777 = vadd.xlane.f32.xlu0 %v776
        %v778 = vpop.xlane.xlu0 %777
        %v779 = vrcp.pop %v778
        %v780 = vmul.f32 %v775, %v779
        %v782 = vsel %vm693, %v780, 0
        %784 = vmatprep.subr.mxu0 0.0
        %785 = vmatpush1.msra.mxu0 0.0
        %786 = vmatprep.subr.mxu0 0.0
        %787 = vmatpush1.msra.mxu0 0.0
        %788 = vmatprep.subr.mxu0 0.0
        %789 = vmatpush1.msra.mxu0 0.0
        %790 = vmatprep.subr.mxu0 0.0
        %791 = vmatpush1.msra.mxu0 0.0
        %792 = vmatprep.subr.mxu0 0.0
        %793 = vmatpush1.msra.mxu0 0.0
        %794 = vmatprep.subr.mxu0 0.0
        %795 = vmatpush1.msra.mxu0 0.0
        %796 = vmatprep.subr.mxu0 0.0
        %797 = vmatpush1.msra.mxu0 0.0
        %798 = vmatprep.subr.mxu0 0.0
        %799 = vmatpush1.msra.mxu0 0.0
        %800 = vmatprep.subr.mxu0 0.0
        %801 = vmatpush1.msra.mxu0 0.0
        %802 = vmatprep.subr.mxu0 0.0
        %803 = vmatpush1.msra.mxu0 0.0
        %804 = vmatprep.subr.mxu0 0.0
        %805 = vmatpush1.msra.mxu0 0.0
        %806 = vmatprep.subr.mxu0 0.0
        %807 = vmatpush1.msra.mxu0 0.0
        %808 = vmatprep.subr.mxu0 0.0
        %809 = vmatpush1.msra.mxu0 0.0
        %810 = vmatprep.subr.mxu0 0.0
        %811 = vmatpush1.msra.mxu0 0.0
        %812 = vmatprep.subr.mxu0 0.0
        %813 = vmatpush1.msra.mxu0 0.0
        %814 = vmatprep.subr.mxu0 0.0
        %815 = vmatpush1.msra.mxu0 %v689
        %816 = vmatprep.subr.mxu0 0.0
        %817 = vmatpush2.msra.mxu0 0.0
        %818 = vmatprep.subr.mxu0 0.0
        %819 = vmatpush2.msra.mxu0 0.0
        %820 = vmatprep.subr.mxu0 0.0
        %821 = vmatpush2.msra.mxu0 0.0
        %822 = vmatprep.subr.mxu0 0.0
        %823 = vmatpush2.msra.mxu0 0.0
        %824 = vmatprep.subr.mxu0 0.0
        %825 = vmatpush2.msra.mxu0 0.0
        %826 = vmatprep.subr.mxu0 0.0
        %827 = vmatpush2.msra.mxu0 0.0
        %828 = vmatprep.subr.mxu0 0.0
        %829 = vmatpush2.msra.mxu0 0.0
        %830 = vmatprep.subr.mxu0 0.0
        %831 = vmatpush2.msra.mxu0 0.0
        %832 = vmatprep.subr.mxu0 0.0
        %833 = vmatpush2.msra.mxu0 0.0
        %834 = vmatprep.subr.mxu0 0.0
        %835 = vmatpush2.msra.mxu0 0.0
        %836 = vmatprep.subr.mxu0 0.0
        %837 = vmatpush2.msra.mxu0 0.0
        %838 = vmatprep.subr.mxu0 0.0
        %839 = vmatpush2.msra.mxu0 0.0
        %840 = vmatprep.subr.mxu0 0.0
        %841 = vmatpush2.msra.mxu0 0.0
        %842 = vmatprep.subr.mxu0 0.0
        %843 = vmatpush2.msra.mxu0 0.0
        %844 = vmatprep.subr.mxu0 0.0
        %845 = vmatpush2.msra.mxu0 0.0
        %846 = vmatprep.subr.mxu0 0.0
        %847 = vmatpush2.msra.mxu0 0.0
        %848 = vmatprep.mubr.f32.mxu0 0.0
        %849 = vmatmul.mubr.f32.gmra.mxu0 %v782
        %v850 = vpop.f32.mrf.mxu0
        %v851 = vadd.f32 0.0, %v850
        %v852 = vpop.f32.mrf.mxu0
        %853 = vdwg.mxu0
        %854 = vrot.lane.b32.xlu0 %v692, 120
        %v855 = vpop.permute.xlu0 %854
        %856 = vrot.lane.b32.xlu0 %v602, 120
        %v857 = vpop.permute.xlu0 %856
        %v858 = vsel %vm693, %v855, 0
        %v860 = vsel %vm693, %v857, 0
        %862 = vmatprep.subr.mxu0 0.0
        %863 = vmatpush1.xpose.msra.mxu0 0.0
        %864 = vmatprep.subr.mxu0 0.0
        %865 = vmatpush1.xpose.msra.mxu0 0.0
        %866 = vmatprep.subr.mxu0 0.0
        %867 = vmatpush1.xpose.msra.mxu0 0.0
        %868 = vmatprep.subr.mxu0 0.0
        %869 = vmatpush1.xpose.msra.mxu0 0.0
        %870 = vmatprep.subr.mxu0 0.0
        %871 = vmatpush1.xpose.msra.mxu0 0.0
        %872 = vmatprep.subr.mxu0 0.0
        %873 = vmatpush1.xpose.msra.mxu0 0.0
        %874 = vmatprep.subr.mxu0 0.0
        %875 = vmatpush1.xpose.msra.mxu0 0.0
        %876 = vmatprep.subr.mxu0 0.0
        %877 = vmatpush1.xpose.msra.mxu0 0.0
        %878 = vmatprep.subr.mxu0 0.0
        %879 = vmatpush1.xpose.msra.mxu0 0.0
        %880 = vmatprep.subr.mxu0 0.0
        %881 = vmatpush1.xpose.msra.mxu0 0.0
        %882 = vmatprep.subr.mxu0 0.0
        %883 = vmatpush1.xpose.msra.mxu0 0.0
        %884 = vmatprep.subr.mxu0 0.0
        %885 = vmatpush1.xpose.msra.mxu0 0.0
        %886 = vmatprep.subr.mxu0 0.0
        %887 = vmatpush1.xpose.msra.mxu0 0.0
        %888 = vmatprep.subr.mxu0 0.0
        %889 = vmatpush1.xpose.msra.mxu0 0.0
        %890 = vmatprep.subr.mxu0 0.0
        %891 = vmatpush1.xpose.msra.mxu0 0.0
        %892 = vmatprep.subr.mxu0 0.0
        %893 = vmatpush1.xpose.msra.mxu0 %v860
        %894 = vmatprep.subr.mxu0 0.0
        %895 = vmatpush2.xpose.msra.mxu0 0.0
        %896 = vmatprep.subr.mxu0 0.0
        %897 = vmatpush2.xpose.msra.mxu0 0.0
        %898 = vmatprep.subr.mxu0 0.0
        %899 = vmatpush2.xpose.msra.mxu0 0.0
        %900 = vmatprep.subr.mxu0 0.0
        %901 = vmatpush2.xpose.msra.mxu0 0.0
        %902 = vmatprep.subr.mxu0 0.0
        %903 = vmatpush2.xpose.msra.mxu0 0.0
        %904 = vmatprep.subr.mxu0 0.0
        %905 = vmatpush2.xpose.msra.mxu0 0.0
        %906 = vmatprep.subr.mxu0 0.0
        %907 = vmatpush2.xpose.msra.mxu0 0.0
        %908 = vmatprep.subr.mxu0 0.0
        %909 = vmatpush2.xpose.msra.mxu0 0.0
        %910 = vmatprep.subr.mxu0 0.0
        %911 = vmatpush2.xpose.msra.mxu0 0.0
        %912 = vmatprep.subr.mxu0 0.0
        %913 = vmatpush2.xpose.msra.mxu0 0.0
        %914 = vmatprep.subr.mxu0 0.0
        %915 = vmatpush2.xpose.msra.mxu0 0.0
        %916 = vmatprep.subr.mxu0 0.0
        %917 = vmatpush2.xpose.msra.mxu0 0.0
        %918 = vmatprep.subr.mxu0 0.0
        %919 = vmatpush2.xpose.msra.mxu0 0.0
        %920 = vmatprep.subr.mxu0 0.0
        %921 = vmatpush2.xpose.msra.mxu0 0.0
        %922 = vmatprep.subr.mxu0 0.0
        %923 = vmatpush2.xpose.msra.mxu0 0.0
        %924 = vmatprep.subr.mxu0 0.0
        %925 = vmatpush2.xpose.msra.mxu0 0.0
        %926 = vmatprep.mubr.f32.mxu0 0.0
        %927 = vmatmul.mubr.f32.gmra.mxu0 %v858
        %v928 = vpop.f32.mrf.mxu0
        %v929 = vadd.f32 0.0, %v928
        %v930 = vpop.f32.mrf.mxu0
        %931 = vdwg.mxu0
        %v932 = vsel %vm693, %v929, -inf
        %933 = vmax.xlane.f32.xlu0 %v932
        %v934 = vpop.xlane.xlu0 %933
        %v935 = vsub.f32 %v929, %v934
        %v936 = vmul.f32 %v935, 1.442695
        %v937 = vpow.pop %v936
        %v938 = vsel %vm693, %v937, 0.0
        %939 = vadd.xlane.f32.xlu0 %v938
        %v940 = vpop.xlane.xlu0 %939
        %v941 = vrcp.pop %v940
        %v942 = vmul.f32 %v937, %v941
        %944 = vrot.lane.b32.xlu0 %v689, 120
        %v945 = vpop.permute.xlu0 %944
        %v948 = vsel %vm693, %v942, 0
        %950 = vmatprep.subr.mxu0 0.0
        %951 = vmatpush1.msra.mxu0 0.0
        %952 = vmatprep.subr.mxu0 0.0
        %953 = vmatpush1.msra.mxu0 0.0
        %954 = vmatprep.subr.mxu0 0.0
        %955 = vmatpush1.msra.mxu0 0.0
        %956 = vmatprep.subr.mxu0 0.0
        %957 = vmatpush1.msra.mxu0 0.0
        %958 = vmatprep.subr.mxu0 0.0
        %959 = vmatpush1.msra.mxu0 0.0
        %960 = vmatprep.subr.mxu0 0.0
        %961 = vmatpush1.msra.mxu0 0.0
        %962 = vmatprep.subr.mxu0 0.0
        %963 = vmatpush1.msra.mxu0 0.0
        %964 = vmatprep.subr.mxu0 0.0
        %965 = vmatpush1.msra.mxu0 0.0
        %966 = vmatprep.subr.mxu0 0.0
        %967 = vmatpush1.msra.mxu0 0.0
        %968 = vmatprep.subr.mxu0 0.0
        %969 = vmatpush1.msra.mxu0 0.0
        %970 = vmatprep.subr.mxu0 0.0
        %971 = vmatpush1.msra.mxu0 0.0
        %972 = vmatprep.subr.mxu0 0.0
        %973 = vmatpush1.msra.mxu0 0.0
        %974 = vmatprep.subr.mxu0 0.0
        %975 = vmatpush1.msra.mxu0 0.0
        %976 = vmatprep.subr.mxu0 0.0
        %977 = vmatpush1.msra.mxu0 0.0
        %978 = vmatprep.subr.mxu0 0.0
        %979 = vmatpush1.msra.mxu0 0.0
        %980 = vmatprep.subr.mxu0 0.0
        %981 = vmatpush1.msra.mxu0 %v945
        %982 = vmatprep.subr.mxu0 0.0
        %983 = vmatpush2.msra.mxu0 0.0
        %984 = vmatprep.subr.mxu0 0.0
        %985 = vmatpush2.msra.mxu0 0.0
        %986 = vmatprep.subr.mxu0 0.0
        %987 = vmatpush2.msra.mxu0 0.0
        %988 = vmatprep.subr.mxu0 0.0
        %989 = vmatpush2.msra.mxu0 0.0
        %990 = vmatprep.subr.mxu0 0.0
        %991 = vmatpush2.msra.mxu0 0.0
        %992 = vmatprep.subr.mxu0 0.0
        %993 = vmatpush2.msra.mxu0 0.0
        %994 = vmatprep.subr.mxu0 0.0
        %995 = vmatpush2.msra.mxu0 0.0
        %996 = vmatprep.subr.mxu0 0.0
        %997 = vmatpush2.msra.mxu0 0.0
        %998 = vmatprep.subr.mxu0 0.0
        %999 = vmatpush2.msra.mxu0 0.0
        %1000 = vmatprep.subr.mxu0 0.0
        %1001 = vmatpush2.msra.mxu0 0.0
        %1002 = vmatprep.subr.mxu0 0.0
        %1003 = vmatpush2.msra.mxu0 0.0
        %1004 = vmatprep.subr.mxu0 0.0
        %1005 = vmatpush2.msra.mxu0 0.0
        %1006 = vmatprep.subr.mxu0 0.0
        %1007 = vmatpush2.msra.mxu0 0.0
        %1008 = vmatprep.subr.mxu0 0.0
        %1009 = vmatpush2.msra.mxu0 0.0
        %1010 = vmatprep.subr.mxu0 0.0
        %1011 = vmatpush2.msra.mxu0 0.0
        %1012 = vmatprep.subr.mxu0 0.0
        %1013 = vmatpush2.msra.mxu0 0.0
        %1014 = vmatprep.mubr.f32.mxu0 0.0
        %1015 = vmatmul.mubr.f32.gmra.mxu0 %v948
        %v1016 = vpop.f32.mrf.mxu0
        %v1017 = vadd.f32 0.0, %v1016
        %v1018 = vpop.f32.mrf.mxu0
        %1019 = vdwg.mxu0
        %1020 = vrot.lane.b32.xlu0 %v692, 112
        %v1021 = vpop.permute.xlu0 %1020
        %1022 = vrot.lane.b32.xlu0 %v602, 112
        %v1023 = vpop.permute.xlu0 %1022
        %v1024 = vsel %vm693, %v1021, 0
        %v1026 = vsel %vm693, %v1023, 0
        %1028 = vmatprep.subr.mxu0 0.0
        %1029 = vmatpush1.xpose.msra.mxu0 0.0
        %1030 = vmatprep.subr.mxu0 0.0
        %1031 = vmatpush1.xpose.msra.mxu0 0.0
        %1032 = vmatprep.subr.mxu0 0.0
        %1033 = vmatpush1.xpose.msra.mxu0 0.0
        %1034 = vmatprep.subr.mxu0 0.0
        %1035 = vmatpush1.xpose.msra.mxu0 0.0
        %1036 = vmatprep.subr.mxu0 0.0
        %1037 = vmatpush1.xpose.msra.mxu0 0.0
        %1038 = vmatprep.subr.mxu0 0.0
        %1039 = vmatpush1.xpose.msra.mxu0 0.0
        %1040 = vmatprep.subr.mxu0 0.0
        %1041 = vmatpush1.xpose.msra.mxu0 0.0
        %1042 = vmatprep.subr.mxu0 0.0
        %1043 = vmatpush1.xpose.msra.mxu0 0.0
        %1044 = vmatprep.subr.mxu0 0.0
        %1045 = vmatpush1.xpose.msra.mxu0 0.0
        %1046 = vmatprep.subr.mxu0 0.0
        %1047 = vmatpush1.xpose.msra.mxu0 0.0
        %1048 = vmatprep.subr.mxu0 0.0
        %1049 = vmatpush1.xpose.msra.mxu0 0.0
        %1050 = vmatprep.subr.mxu0 0.0
        %1051 = vmatpush1.xpose.msra.mxu0 0.0
        %1052 = vmatprep.subr.mxu0 0.0
        %1053 = vmatpush1.xpose.msra.mxu0 0.0
        %1054 = vmatprep.subr.mxu0 0.0
        %1055 = vmatpush1.xpose.msra.mxu0 0.0
        %1056 = vmatprep.subr.mxu0 0.0
        %1057 = vmatpush1.xpose.msra.mxu0 0.0
        %1058 = vmatprep.subr.mxu0 0.0
        %1059 = vmatpush1.xpose.msra.mxu0 %v1026
        %1060 = vmatprep.subr.mxu0 0.0
        %1061 = vmatpush2.xpose.msra.mxu0 0.0
        %1062 = vmatprep.subr.mxu0 0.0
        %1063 = vmatpush2.xpose.msra.mxu0 0.0
        %1064 = vmatprep.subr.mxu0 0.0
        %1065 = vmatpush2.xpose.msra.mxu0 0.0
        %1066 = vmatprep.subr.mxu0 0.0
        %1067 = vmatpush2.xpose.msra.mxu0 0.0
        %1068 = vmatprep.subr.mxu0 0.0
        %1069 = vmatpush2.xpose.msra.mxu0 0.0
        %1070 = vmatprep.subr.mxu0 0.0
        %1071 = vmatpush2.xpose.msra.mxu0 0.0
        %1072 = vmatprep.subr.mxu0 0.0
        %1073 = vmatpush2.xpose.msra.mxu0 0.0
        %1074 = vmatprep.subr.mxu0 0.0
        %1075 = vmatpush2.xpose.msra.mxu0 0.0
        %1076 = vmatprep.subr.mxu0 0.0
        %1077 = vmatpush2.xpose.msra.mxu0 0.0
        %1078 = vmatprep.subr.mxu0 0.0
        %1079 = vmatpush2.xpose.msra.mxu0 0.0
        %1080 = vmatprep.subr.mxu0 0.0
        %1081 = vmatpush2.xpose.msra.mxu0 0.0
        %1082 = vmatprep.subr.mxu0 0.0
        %1083 = vmatpush2.xpose.msra.mxu0 0.0
        %1084 = vmatprep.subr.mxu0 0.0
        %1085 = vmatpush2.xpose.msra.mxu0 0.0
        %1086 = vmatprep.subr.mxu0 0.0
        %1087 = vmatpush2.xpose.msra.mxu0 0.0
        %1088 = vmatprep.subr.mxu0 0.0
        %1089 = vmatpush2.xpose.msra.mxu0 0.0
        %1090 = vmatprep.subr.mxu0 0.0
        %1091 = vmatpush2.xpose.msra.mxu0 0.0
        %1092 = vmatprep.mubr.f32.mxu0 0.0
        %1093 = vmatmul.mubr.f32.gmra.mxu0 %v1024
        %v1094 = vpop.f32.mrf.mxu0
        %v1095 = vadd.f32 0.0, %v1094
        %v1096 = vpop.f32.mrf.mxu0
        %1097 = vdwg.mxu0
        %v1098 = vsel %vm693, %v1095, -inf
        %1099 = vmax.xlane.f32.xlu0 %v1098
        %v1100 = vpop.xlane.xlu0 %1099
        %v1101 = vsub.f32 %v1095, %v1100
        %v1102 = vmul.f32 %v1101, 1.442695
        %v1103 = vpow.pop %v1102
        %v1104 = vsel %vm693, %v1103, 0.0
        %1105 = vadd.xlane.f32.xlu0 %v1104
        %v1106 = vpop.xlane.xlu0 %1105
        %v1107 = vrcp.pop %v1106
        %v1108 = vmul.f32 %v1103, %v1107
        %1109 = vrot.lane.b32.xlu0 %v689, 112
        %v1110 = vpop.permute.xlu0 %1109
        %v1113 = vsel %vm693, %v1108, 0
        %1115 = vmatprep.subr.mxu0 0.0
        %1116 = vmatpush1.msra.mxu0 0.0
        %1117 = vmatprep.subr.mxu0 0.0
        %1118 = vmatpush1.msra.mxu0 0.0
        %1119 = vmatprep.subr.mxu0 0.0
        %1120 = vmatpush1.msra.mxu0 0.0
        %1121 = vmatprep.subr.mxu0 0.0
        %1122 = vmatpush1.msra.mxu0 0.0
        %1123 = vmatprep.subr.mxu0 0.0
        %1124 = vmatpush1.msra.mxu0 0.0
        %1125 = vmatprep.subr.mxu0 0.0
        %1126 = vmatpush1.msra.mxu0 0.0
        %1127 = vmatprep.subr.mxu0 0.0
        %1128 = vmatpush1.msra.mxu0 0.0
        %1129 = vmatprep.subr.mxu0 0.0
        %1130 = vmatpush1.msra.mxu0 0.0
        %1131 = vmatprep.subr.mxu0 0.0
        %1132 = vmatpush1.msra.mxu0 0.0
        %1133 = vmatprep.subr.mxu0 0.0
        %1134 = vmatpush1.msra.mxu0 0.0
        %1135 = vmatprep.subr.mxu0 0.0
        %1136 = vmatpush1.msra.mxu0 0.0
        %1137 = vmatprep.subr.mxu0 0.0
        %1138 = vmatpush1.msra.mxu0 0.0
        %1139 = vmatprep.subr.mxu0 0.0
        %1140 = vmatpush1.msra.mxu0 0.0
        %1141 = vmatprep.subr.mxu0 0.0
        %1142 = vmatpush1.msra.mxu0 0.0
        %1143 = vmatprep.subr.mxu0 0.0
        %1144 = vmatpush1.msra.mxu0 0.0
        %1145 = vmatprep.subr.mxu0 0.0
        %1146 = vmatpush1.msra.mxu0 %v1110
        %1147 = vmatprep.subr.mxu0 0.0
        %1148 = vmatpush2.msra.mxu0 0.0
        %1149 = vmatprep.subr.mxu0 0.0
        %1150 = vmatpush2.msra.mxu0 0.0
        %1151 = vmatprep.subr.mxu0 0.0
        %1152 = vmatpush2.msra.mxu0 0.0
        %1153 = vmatprep.subr.mxu0 0.0
        %1154 = vmatpush2.msra.mxu0 0.0
        %1155 = vmatprep.subr.mxu0 0.0
        %1156 = vmatpush2.msra.mxu0 0.0
        %1157 = vmatprep.subr.mxu0 0.0
        %1158 = vmatpush2.msra.mxu0 0.0
        %1159 = vmatprep.subr.mxu0 0.0
        %1160 = vmatpush2.msra.mxu0 0.0
        %1161 = vmatprep.subr.mxu0 0.0
        %1162 = vmatpush2.msra.mxu0 0.0
        %1163 = vmatprep.subr.mxu0 0.0
        %1164 = vmatpush2.msra.mxu0 0.0
        %1165 = vmatprep.subr.mxu0 0.0
        %1166 = vmatpush2.msra.mxu0 0.0
        %1167 = vmatprep.subr.mxu0 0.0
        %1168 = vmatpush2.msra.mxu0 0.0
        %1169 = vmatprep.subr.mxu0 0.0
        %1170 = vmatpush2.msra.mxu0 0.0
        %1171 = vmatprep.subr.mxu0 0.0
        %1172 = vmatpush2.msra.mxu0 0.0
        %1173 = vmatprep.subr.mxu0 0.0
        %1174 = vmatpush2.msra.mxu0 0.0
        %1175 = vmatprep.subr.mxu0 0.0
        %1176 = vmatpush2.msra.mxu0 0.0
        %1177 = vmatprep.subr.mxu0 0.0
        %1178 = vmatpush2.msra.mxu0 0.0
        %1179 = vmatprep.mubr.f32.mxu0 0.0
        %1180 = vmatmul.mubr.f32.gmra.mxu0 %v1113
        %v1181 = vpop.f32.mrf.mxu0
        %v1182 = vadd.f32 0.0, %v1181
        %v1183 = vpop.f32.mrf.mxu0
        %1184 = vdwg.mxu0
        %1185 = vrot.lane.b32.xlu0 %v692, 104
        %v1186 = vpop.permute.xlu0 %1185
        %1187 = vrot.lane.b32.xlu0 %v602, 104
        %v1188 = vpop.permute.xlu0 %1187
        %v1189 = vsel %vm693, %v1186, 0
        %v1191 = vsel %vm693, %v1188, 0
        %1193 = vmatprep.subr.mxu0 0.0
        %1194 = vmatpush1.xpose.msra.mxu0 0.0
        %1195 = vmatprep.subr.mxu0 0.0
        %1196 = vmatpush1.xpose.msra.mxu0 0.0
        %1197 = vmatprep.subr.mxu0 0.0
        %1198 = vmatpush1.xpose.msra.mxu0 0.0
        %1199 = vmatprep.subr.mxu0 0.0
        %1200 = vmatpush1.xpose.msra.mxu0 0.0
        %1201 = vmatprep.subr.mxu0 0.0
        %1202 = vmatpush1.xpose.msra.mxu0 0.0
        %1203 = vmatprep.subr.mxu0 0.0
        %1204 = vmatpush1.xpose.msra.mxu0 0.0
        %1205 = vmatprep.subr.mxu0 0.0
        %1206 = vmatpush1.xpose.msra.mxu0 0.0
        %1207 = vmatprep.subr.mxu0 0.0
        %1208 = vmatpush1.xpose.msra.mxu0 0.0
        %1209 = vmatprep.subr.mxu0 0.0
        %1210 = vmatpush1.xpose.msra.mxu0 0.0
        %1211 = vmatprep.subr.mxu0 0.0
        %1212 = vmatpush1.xpose.msra.mxu0 0.0
        %1213 = vmatprep.subr.mxu0 0.0
        %1214 = vmatpush1.xpose.msra.mxu0 0.0
        %1215 = vmatprep.subr.mxu0 0.0
        %1216 = vmatpush1.xpose.msra.mxu0 0.0
        %1217 = vmatprep.subr.mxu0 0.0
        %1218 = vmatpush1.xpose.msra.mxu0 0.0
        %1219 = vmatprep.subr.mxu0 0.0
        %1220 = vmatpush1.xpose.msra.mxu0 0.0
        %1221 = vmatprep.subr.mxu0 0.0
        %1222 = vmatpush1.xpose.msra.mxu0 0.0
        %1223 = vmatprep.subr.mxu0 0.0
        %1224 = vmatpush1.xpose.msra.mxu0 %v1191
        %1225 = vmatprep.subr.mxu0 0.0
        %1226 = vmatpush2.xpose.msra.mxu0 0.0
        %1227 = vmatprep.subr.mxu0 0.0
        %1228 = vmatpush2.xpose.msra.mxu0 0.0
        %1229 = vmatprep.subr.mxu0 0.0
        %1230 = vmatpush2.xpose.msra.mxu0 0.0
        %1231 = vmatprep.subr.mxu0 0.0
        %1232 = vmatpush2.xpose.msra.mxu0 0.0
        %1233 = vmatprep.subr.mxu0 0.0
        %1234 = vmatpush2.xpose.msra.mxu0 0.0
        %1235 = vmatprep.subr.mxu0 0.0
        %1236 = vmatpush2.xpose.msra.mxu0 0.0
        %1237 = vmatprep.subr.mxu0 0.0
        %1238 = vmatpush2.xpose.msra.mxu0 0.0
        %1239 = vmatprep.subr.mxu0 0.0
        %1240 = vmatpush2.xpose.msra.mxu0 0.0
        %1241 = vmatprep.subr.mxu0 0.0
        %1242 = vmatpush2.xpose.msra.mxu0 0.0
        %1243 = vmatprep.subr.mxu0 0.0
        %1244 = vmatpush2.xpose.msra.mxu0 0.0
        %1245 = vmatprep.subr.mxu0 0.0
        %1246 = vmatpush2.xpose.msra.mxu0 0.0
        %1247 = vmatprep.subr.mxu0 0.0
        %1248 = vmatpush2.xpose.msra.mxu0 0.0
        %1249 = vmatprep.subr.mxu0 0.0
        %1250 = vmatpush2.xpose.msra.mxu0 0.0
        %1251 = vmatprep.subr.mxu0 0.0
        %1252 = vmatpush2.xpose.msra.mxu0 0.0
        %1253 = vmatprep.subr.mxu0 0.0
        %1254 = vmatpush2.xpose.msra.mxu0 0.0
        %1255 = vmatprep.subr.mxu0 0.0
        %1256 = vmatpush2.xpose.msra.mxu0 0.0
        %1257 = vmatprep.mubr.f32.mxu0 0.0
        %1258 = vmatmul.mubr.f32.gmra.mxu0 %v1189
        %v1259 = vpop.f32.mrf.mxu0
        %v1260 = vadd.f32 0.0, %v1259
        %v1261 = vpop.f32.mrf.mxu0
        %1262 = vdwg.mxu0
        %v1263 = vsel %vm693, %v1260, -inf
        %1264 = vmax.xlane.f32.xlu0 %v1263
        %v1265 = vpop.xlane.xlu0 %1264
        %v1266 = vsub.f32 %v1260, %v1265
        %v1267 = vmul.f32 %v1266, 1.442695
        %v1268 = vpow.pop %v1267
        %v1269 = vsel %vm693, %v1268, 0.0
        %1270 = vadd.xlane.f32.xlu0 %v1269
        %v1271 = vpop.xlane.xlu0 %1270
        %v1272 = vrcp.pop %v1271
        %v1273 = vmul.f32 %v1268, %v1272
        %1274 = vrot.lane.b32.xlu0 %v689, 104
        %v1275 = vpop.permute.xlu0 %1274
        %v1278 = vsel %vm693, %v1273, 0
        %1280 = vmatprep.subr.mxu0 0.0
        %1281 = vmatpush1.msra.mxu0 0.0
        %1282 = vmatprep.subr.mxu0 0.0
        %1283 = vmatpush1.msra.mxu0 0.0
        %1284 = vmatprep.subr.mxu0 0.0
        %1285 = vmatpush1.msra.mxu0 0.0
        %1286 = vmatprep.subr.mxu0 0.0
        %1287 = vmatpush1.msra.mxu0 0.0
        %1288 = vmatprep.subr.mxu0 0.0
        %1289 = vmatpush1.msra.mxu0 0.0
        %1290 = vmatprep.subr.mxu0 0.0
        %1291 = vmatpush1.msra.mxu0 0.0
        %1292 = vmatprep.subr.mxu0 0.0
        %1293 = vmatpush1.msra.mxu0 0.0
        %1294 = vmatprep.subr.mxu0 0.0
        %1295 = vmatpush1.msra.mxu0 0.0
        %1296 = vmatprep.subr.mxu0 0.0
        %1297 = vmatpush1.msra.mxu0 0.0
        %1298 = vmatprep.subr.mxu0 0.0
        %1299 = vmatpush1.msra.mxu0 0.0
        %1300 = vmatprep.subr.mxu0 0.0
        %1301 = vmatpush1.msra.mxu0 0.0
        %1302 = vmatprep.subr.mxu0 0.0
        %1303 = vmatpush1.msra.mxu0 0.0
        %1304 = vmatprep.subr.mxu0 0.0
        %1305 = vmatpush1.msra.mxu0 0.0
        %1306 = vmatprep.subr.mxu0 0.0
        %1307 = vmatpush1.msra.mxu0 0.0
        %1308 = vmatprep.subr.mxu0 0.0
        %1309 = vmatpush1.msra.mxu0 0.0
        %1310 = vmatprep.subr.mxu0 0.0
        %1311 = vmatpush1.msra.mxu0 %v1275
        %1312 = vmatprep.subr.mxu0 0.0
        %1313 = vmatpush2.msra.mxu0 0.0
        %1314 = vmatprep.subr.mxu0 0.0
        %1315 = vmatpush2.msra.mxu0 0.0
        %1316 = vmatprep.subr.mxu0 0.0
        %1317 = vmatpush2.msra.mxu0 0.0
        %1318 = vmatprep.subr.mxu0 0.0
        %1319 = vmatpush2.msra.mxu0 0.0
        %1320 = vmatprep.subr.mxu0 0.0
        %1321 = vmatpush2.msra.mxu0 0.0
        %1322 = vmatprep.subr.mxu0 0.0
        %1323 = vmatpush2.msra.mxu0 0.0
        %1324 = vmatprep.subr.mxu0 0.0
        %1325 = vmatpush2.msra.mxu0 0.0
        %1326 = vmatprep.subr.mxu0 0.0
        %1327 = vmatpush2.msra.mxu0 0.0
        %1328 = vmatprep.subr.mxu0 0.0
        %1329 = vmatpush2.msra.mxu0 0.0
        %1330 = vmatprep.subr.mxu0 0.0
        %1331 = vmatpush2.msra.mxu0 0.0
        %1332 = vmatprep.subr.mxu0 0.0
        %1333 = vmatpush2.msra.mxu0 0.0
        %1334 = vmatprep.subr.mxu0 0.0
        %1335 = vmatpush2.msra.mxu0 0.0
        %1336 = vmatprep.subr.mxu0 0.0
        %1337 = vmatpush2.msra.mxu0 0.0
        %1338 = vmatprep.subr.mxu0 0.0
        %1339 = vmatpush2.msra.mxu0 0.0
        %1340 = vmatprep.subr.mxu0 0.0
        %1341 = vmatpush2.msra.mxu0 0.0
        %1342 = vmatprep.subr.mxu0 0.0
        %1343 = vmatpush2.msra.mxu0 0.0
        %1344 = vmatprep.mubr.f32.mxu0 0.0
        %1345 = vmatmul.mubr.f32.gmra.mxu0 %v1278
        %v1346 = vpop.f32.mrf.mxu0
        %v1347 = vadd.f32 0.0, %v1346
        %v1348 = vpop.f32.mrf.mxu0
        %1349 = vdwg.mxu0
        %1351 = vrot.lane.b32.xlu0 %v1017, 8
        %v1352 = vpop.permute.xlu0 %1351
        %1355 = vrot.lane.b32.xlu0 %v1182, 16
        %v1356 = vpop.permute.xlu0 %1355
        %1359 = vrot.lane.b32.xlu0 %v1347, 24
        %v1360 = vpop.permute.xlu0 %1359
        %v1362 = vsel %vm693, %v851, %v1352
        %vm1363 = vcmask 130048
        %v1364 = vsel %vm1363, %v1362, %v1356
        %vm1365 = vcmask 195584
        %v1366 = vsel %vm1365, %v1364, %v1360
        %v1367 = vld [vmem:[#allocation10] sm:$0xff]
        %v1368 = vld [vmem:[#allocation10 + $0x8] sm:$0xff]
        %v1369 = vld [vmem:[#allocation10 + $0x10] sm:$0xff]
        %v1370 = vld [vmem:[#allocation10 + $0x18] sm:$0xff]
        %v1371 = vld [vmem:[%s6] sm:$0x1]
        %v1373 = vlaneseq
        %v1374 = vshrl.u32 %v1373, 7
        %v1375 = vsub.s32 0, %v1374
        %v1376 = vrot.slane %v1371, %v1375
        %v1379 = vsel %vm444, %v1366, 0
        %1381 = vmatprep.subr.mxu0 0.0
        %1382 = vmatpush1.msra.mxu0 0.0
        %1383 = vmatprep.subr.mxu0 0.0
        %1384 = vmatpush1.msra.mxu0 0.0
        %1385 = vmatprep.subr.mxu0 0.0
        %1386 = vmatpush1.msra.mxu0 0.0
        %1387 = vmatprep.subr.mxu0 0.0
        %1388 = vmatpush1.msra.mxu0 0.0
        %1389 = vmatprep.subr.mxu0 0.0
        %1390 = vmatpush1.msra.mxu0 0.0
        %1391 = vmatprep.subr.mxu0 0.0
        %1392 = vmatpush1.msra.mxu0 0.0
        %1393 = vmatprep.subr.mxu0 0.0
        %1394 = vmatpush1.msra.mxu0 0.0
        %1395 = vmatprep.subr.mxu0 0.0
        %1396 = vmatpush1.msra.mxu0 0.0
        %1397 = vmatprep.subr.mxu0 0.0
        %1398 = vmatpush1.msra.mxu0 0.0
        %1399 = vmatprep.subr.mxu0 0.0
        %1400 = vmatpush1.msra.mxu0 0.0
        %1401 = vmatprep.subr.mxu0 0.0
        %1402 = vmatpush1.msra.mxu0 0.0
        %1403 = vmatprep.subr.mxu0 0.0
        %1404 = vmatpush1.msra.mxu0 0.0
        %1405 = vmatprep.subr.mxu0 0.0
        %1406 = vmatpush1.msra.mxu0 %v1370
        %1407 = vmatprep.subr.mxu0 0.0
        %1408 = vmatpush1.msra.mxu0 %v1369
        %1409 = vmatprep.subr.mxu0 0.0
        %1410 = vmatpush1.msra.mxu0 %v1368
        %1411 = vmatprep.subr.mxu0 0.0
        %1412 = vmatpush1.msra.mxu0 %v1367
        %1413 = vmatprep.subr.mxu0 0.0
        %1414 = vmatpush2.msra.mxu0 0.0
        %1415 = vmatprep.subr.mxu0 0.0
        %1416 = vmatpush2.msra.mxu0 0.0
        %1417 = vmatprep.subr.mxu0 0.0
        %1418 = vmatpush2.msra.mxu0 0.0
        %1419 = vmatprep.subr.mxu0 0.0
        %1420 = vmatpush2.msra.mxu0 0.0
        %1421 = vmatprep.subr.mxu0 0.0
        %1422 = vmatpush2.msra.mxu0 0.0
        %1423 = vmatprep.subr.mxu0 0.0
        %1424 = vmatpush2.msra.mxu0 0.0
        %1425 = vmatprep.subr.mxu0 0.0
        %1426 = vmatpush2.msra.mxu0 0.0
        %1427 = vmatprep.subr.mxu0 0.0
        %1428 = vmatpush2.msra.mxu0 0.0
        %1429 = vmatprep.subr.mxu0 0.0
        %1430 = vmatpush2.msra.mxu0 0.0
        %1431 = vmatprep.subr.mxu0 0.0
        %1432 = vmatpush2.msra.mxu0 0.0
        %1433 = vmatprep.subr.mxu0 0.0
        %1434 = vmatpush2.msra.mxu0 0.0
        %1435 = vmatprep.subr.mxu0 0.0
        %1436 = vmatpush2.msra.mxu0 0.0
        %1437 = vmatprep.subr.mxu0 0.0
        %1438 = vmatpush2.msra.mxu0 0.0
        %1439 = vmatprep.subr.mxu0 0.0
        %1440 = vmatpush2.msra.mxu0 0.0
        %1441 = vmatprep.subr.mxu0 0.0
        %1442 = vmatpush2.msra.mxu0 0.0
        %1443 = vmatprep.subr.mxu0 0.0
        %1444 = vmatpush2.msra.mxu0 0.0
        %1445 = vmatprep.mubr.f32.mxu0 0.0
        %1446 = vmatmul.mubr.f32.gmra.mxu0 %v1379
        %v1447 = vpop.f32.mrf.mxu0
        %v1448 = vadd.f32 %v1376, %v1447
        %v1449 = vpop.f32.mrf.mxu0
        %1450 = vdwg.mxu0
        %1451 = vst.msk [vmem:[%s424] sm:$0xff] %vm444, %v1448
        %1452 = vst.msk [vmem:[%s431] sm:$0xff] %vm693, %v780
        %1453 = vst.msk [vmem:[%s431 + $0x8] sm:$0xff] %vm693, %v942
        %1454 = vst.msk [vmem:[%s431 + $0x10] sm:$0xff] %vm693, %v1108
        %1455 = vst.msk [vmem:[%s431 + $0x18] sm:$0xff] %vm693, %v1273
        %s1456 = sand.u32 %s203, 1
        %s1457 = scalar_lea.sflag [#allocation4], %s1456
        %s1458 = sand.u32 %s203, 1
        %s1459 = smul.addr %s1458, 8
        %s1460 = scalar_lea.vmem [#allocation11], %s1459
        %s1461 = sand.u32 %s229, 1
        %s1462 = scalar_lea.sflag [#allocation13], %s1461
        %s1463 = sand.u32 %s229, 1
        %s1464 = smul.addr %s1463, 32
        %s1465 = scalar_lea.vmem [#allocation12], %s1464
        // Predicated region
        $region69: #{tpu_custom_call.1} parent=47 // pred_check
          %p1466 = pneg %p213
        $region70: #{tpu_custom_call.1} parent=47 // pred_check_branch
          %1468 = sbr.rel (%p1466) target = $region72
        $region71: #{tpu_custom_call.1} parent=47 // pred_region
          %s1470 = ssub.s32 128, 128
          %1471 = vsyncadd %s1457, %s1470
          %s1472 = smul.addr %s33, 128
          %s1473 = scalar_lea.hbm %s7, %s1472
          %s1475 = sshll.u32 %s1460, 4
          %s1476 = int_to_ptr.vmem [resolvable:$true] %s1475
          %1478 = dma.vmem_to_hbm [thread:$0]  %s1476, 128, %s1473, %s1457
        $region72: #{tpu_custom_call.1} parent=47 // pred_fallthru
          _
        // Predicated region
        $region73: #{tpu_custom_call.1} parent=47 // pred_check
          %p1479 = pneg %p239
        $region74: #{tpu_custom_call.1} parent=47 // pred_check_branch
          %1481 = sbr.rel (%p1479) target = $region76
        $region75: #{tpu_custom_call.1} parent=47 // pred_region
          %s1483 = ssub.s32 512, 512
          %1484 = vsyncadd %s1462, %s1483
          %s1485 = smul.addr %s33, 4
          %s1486 = smul.addr %s1485, 128
          %s1487 = scalar_lea.hbm %s8, %s1486
          %s1488 = sshll.u32 %s1465, 4
          %s1489 = int_to_ptr.vmem [resolvable:$true] %s1488
          %1494 = dma.vmem_to_hbm [thread:$0]  %s1489, 512, %s1487, %s1462, 128, 128, 8
        $region76: #{tpu_custom_call.1} parent=47 // pred_fallthru
          _
      $region48: #{tpu_custom_call.1} parent=5 // pred_fallthru
        _
      %p1495 = scmp.le.s32.totalorder 2, %s28
      // Predicated region
      $region77: #{tpu_custom_call.1} parent=5 // pred_check
        %p1496 = pneg %p1495
      $region78: #{tpu_custom_call.1} parent=5 // pred_check_branch
        %1498 = sbr.rel (%p1496) target = $region80
      $region79: #{tpu_custom_call.1} parent=5 // pred_region
        %s1499 = ssub.s32 %s28, 2
        // Predicated region
        $region81: #{tpu_custom_call.1} parent=79 // pred_check
          %p1500 = pneg %p219
        $region82: #{tpu_custom_call.1} parent=79 // pred_check_branch
          %1502 = sbr.rel (%p1500) target = $region84
        $region83: #{tpu_custom_call.1} parent=79 // pred_region
          %s1503 = sand.u32 %s204, 1
          %s1504 = scalar_lea.sflag [#allocation4], %s1503
          %s1505 = sand.u32 %s204, 1
          %s1506 = smul.addr %s1505, 8
          %s1507 = scalar_lea.vmem [#allocation11], %s1506
          %1508 = dma.done %s1504, 128
        $region84: #{tpu_custom_call.1} parent=79 // pred_fallthru
          _
        // Predicated region
        $region85: #{tpu_custom_call.1} parent=79 // pred_check
          %p1509 = pneg %p245
        $region86: #{tpu_custom_call.1} parent=79 // pred_check_branch
          %1511 = sbr.rel (%p1509) target = $region88
        $region87: #{tpu_custom_call.1} parent=79 // pred_region
          %s1512 = sand.u32 %s230, 1
          %s1513 = scalar_lea.sflag [#allocation13], %s1512
          %s1514 = sand.u32 %s230, 1
          %s1515 = smul.addr %s1514, 32
          %s1516 = scalar_lea.vmem [#allocation12], %s1515
          %1517 = dma.done %s1513, 512
        $region88: #{tpu_custom_call.1} parent=79 // pred_fallthru
          _
      $region80: #{tpu_custom_call.1} parent=5 // pred_fallthru
        _
    $region6: #{tpu_custom_call.1} parent=1 // loop_footer
      %s32 = sadd.s32 1, %s28
    $region7: #{tpu_custom_call.1} parent=1 // loop_footer_branch
      %27 = sbr.rel target = $region3
    $region8: #{tpu_custom_call.1} parent=1 // loop_exit
      _
    %1518 = vsyncpa [#allocation3], 1
    %s1519 = scalar_lea.sflag [#allocation3], 1
    %1520 = vsyncpa %s1519, 1
    %1521 = vsyncpa [#allocation6], 1
    %s1522 = scalar_lea.sflag [#allocation6], 1
    %1523 = vsyncpa %s1522, 1
    %1524 = vsyncpa [#allocation9], 1
    %1525 = vsyncpa [#allocation4], 1
    %s1526 = scalar_lea.sflag [#allocation4], 1
    %1527 = vsyncpa %s1526, 1
    %1528 = vsyncpa [#allocation13], 1
    %s1529 = scalar_lea.sflag [#allocation13], 1
    %1530 = vsyncpa %s1529, 1

</llo_original>
